<compile_context>
chip_gen: v7x
topology: tpu7x:2x2x1
jax: 0.10.0
libtpu: 0.0.40
codegen_flags: <defaults>
</compile_context>

<pallas_src>
import functools

import jax
import jax.numpy as jnp
import numpy as np
from jax import lax
from jax.experimental import pallas as pl
from jax.experimental.pallas import tpu as pltpu


# ---------------------------------------------------------------------------
# Kernel: one full MultiConv block (all conv_num layers), single grid step.
# ---------------------------------------------------------------------------
def _multiconv_kernel(*refs, n, fs, eps, layer_shapes, stride_first):
    """
    refs = (x, R, Rt, (T_l, gamma_l, beta_l) * L, out, pad_scratch_l ...)

      x   : [N, H, W*Cin]            if stride_first == 1
            [2, N, Hpe//2, Wp*Cin]   if stride_first == 2 (padded + row-parity split)
      R   : [Wo*Cout, Cout]   fused-lane -> per-channel reduction matrix
      Rt  : [Cout, Wo*Cout]   per-channel -> fused-lane broadcast matrix
      T_l : [fs, Wp_l*Cin_l, Wo*Cout] block-Toeplitz conv weights (stride folded in)
      gamma_l, beta_l : [1, Cout]
      out : [N*Ho_last, Wo*Cout]      lane-dense result
      pad_scratch_l : [N, Hp_l, Wp_l*Cin_l]  zero-padded fused activation (VMEM)

    layer_shapes[l] = (Hin, Win, Cin, Ho, Wo, Cout)
    """
    L = len(layer_shapes)
    x_ref, r_ref, rt_ref = refs[0], refs[1], refs[2]
    layer_refs = [refs[3 + 3 * l: 6 + 3 * l] for l in range(L)]
    o_ref = refs[3 + 3 * L]
    scratch = list(refs[4 + 3 * L:])

    pad = (fs - 1) // 2
    R = r_ref[...]          # [Wo*Cout, Cout]
    Rt = rt_ref[...]        # [Cout, Wo*Cout]

    y = None                # previous layer activation, fused [n*Ho, Wo*Cout]
    si = 0
    for l in range(L):
        Hin, Win, Cin, Ho, Wo, Cout = layer_shapes[l]
        t_ref, g_ref, b_ref = layer_refs[l]
        stride = stride_first if l == 0 else 1

        if l == 0 and stride == 2:
            # Input already padded + split by row parity in the wrapper; the
            # horizontal stride lives inside the block-Toeplitz weights.
            ph = (x_ref[0], x_ref[1])          # each [n, Hpe//2, Wp*Cin]

            def lhs_rows(dy, ph=ph, Ho=Ho):
                return ph[dy % 2][:, dy // 2: dy // 2 + Ho, :]
        else:
            # In-kernel zero padding into a VMEM scratch (no HBM round trip).
            pad_ref = scratch[si]
            si += 1
            pad_ref[...] = jnp.zeros(pad_ref.shape, jnp.float32)
            src = x_ref[...] if l == 0 else y.reshape(n, Hin, Win * Cin)
            pad_ref[:, pad:pad + Hin, pad * Cin:(pad + Win) * Cin] = src
            xp = pad_ref[...]                  # [n, Hp, Wp*Cin]

            def lhs_rows(dy, xp=xp, Ho=Ho):
                return xp[:, dy:dy + Ho, :]

        # ---- Convolution: fs block-Toeplitz MXU matmuls, f32 accumulation ----
        acc = jnp.zeros((n * Ho, Wo * Cout), jnp.float32)
        for dy in range(fs):
            lhs = lhs_rows(dy).reshape(n * Ho, -1)          # [n*Ho, Wp*Cin]
            acc = acc + jnp.dot(lhs, t_ref[dy],
                                preferred_element_type=jnp.float32)
        # (Conv bias intentionally omitted: the batch-mean subtraction of
        #  training-mode BatchNorm cancels a per-channel bias exactly.)

        # ---- BatchNorm2d (training mode, biased variance), single pass -------
        m_count = float(n * Ho * Wo)
        inv_m = 1.0 / m_count
        s1 = jnp.sum(acc, axis=0, keepdims=True)            # [1, Wo*Cout]
        s2 = jnp.sum(acc * acc, axis=0, keepdims=True)      # [1, Wo*Cout]
        mean = jnp.dot(s1, R, preferred_element_type=jnp.float32) * inv_m   # [1, Cout]
        ex2 = jnp.dot(s2, R, preferred_element_type=jnp.float32) * inv_m    # [1, Cout]
        var = jnp.maximum(ex2 - mean * mean, 0.0)
        scale = g_ref[...] * lax.rsqrt(var + eps)            # [1, Cout]
        shift = b_ref[...] - mean * scale
        scale_f = jnp.dot(scale, Rt, preferred_element_type=jnp.float32)    # [1, Wo*Cout]
        shift_f = jnp.dot(shift, Rt, preferred_element_type=jnp.float32)

        # ---- affine + ReLU, fully lane dense ---------------------------------
        y = jnp.maximum(acc * scale_f + shift_f, 0.0)        # [n*Ho, Wo*Cout]

    o_ref[...] = y


# ---------------------------------------------------------------------------
# Wrapper: builds block-Toeplitz weights / fold matrices and calls the kernel.
# ---------------------------------------------------------------------------
def multiconv_forward(x_nchw, layers, *, filter_size, downsample_first, eps=1e-5):
    """layers: list of (w_pt [Cout,Cin,fs,fs], gamma [Cout], beta [Cout]). NCHW in/out."""
    fs = filter_size
    pad = (fs - 1) // 2
    x = jnp.transpose(x_nchw, (0, 2, 3, 1)).astype(jnp.float32)   # NHWC
    N, H, W, C0 = x.shape
    stride_first = 2 if downsample_first else 1

    # Per-layer geometry (PyTorch Conv2d output formula).
    layer_shapes = []
    Hin, Win, Cin = H, W, C0
    for l, (w_pt, _, _) in enumerate(layers):
        s = stride_first if l == 0 else 1
        Cout = int(w_pt.shape[0])
        Ho = (Hin + 2 * pad - fs) // s + 1
        Wo = (Win + 2 * pad - fs) // s + 1
        layer_shapes.append((Hin, Win, Cin, Ho, Wo, Cout))
        Hin, Win, Cin = Ho, Wo, Cout
    Ho_out, Wo_out, C_out = Hin, Win, Cin        # same (Wo, Cout) for every layer

    # Constant fold / broadcast matrices between the fused lane layout and channels.
    R_np = np.kron(np.ones((Wo_out, 1), np.float32), np.eye(C_out, dtype=np.float32))
    R = jnp.asarray(R_np)        # [Wo*C, C]
    Rt = jnp.asarray(R_np.T)     # [C, Wo*C]

    inputs = []
    scratch_shapes = []

    # Layer-0 input presentation.
    if stride_first == 2:
        Hp0, Wp0 = H + 2 * pad, W + 2 * pad
        Hpe = Hp0 + (Hp0 % 2)
        xpad = jnp.pad(x, ((0, 0), (pad, pad + Hp0 % 2), (pad, pad), (0, 0)))
        xph = xpad.reshape(N, Hpe // 2, 2, Wp0, C0)
        xph = jnp.transpose(xph, (2, 0, 1, 3, 4)).reshape(2, N, Hpe // 2, Wp0 * C0)
        inputs.append(xph)
    else:
        inputs.append(x.reshape(N, H, W * C0))   # padding happens in-kernel
    inputs.append(R)
    inputs.append(Rt)

    for l, (w_pt, gamma, beta) in enumerate(layers):
        Hin, Win, Cin, Ho, Wo, Cout = layer_shapes[l]
        s = stride_first if l == 0 else 1
        Wp = Win + 2 * pad

        # PyTorch (Cout, Cin, fs, fs) -> (fs_dy, fs_dx, Cin, Cout)
        w4 = jnp.transpose(w_pt, (2, 3, 1, 0)).astype(jnp.float32)
        # one_hot[w, j, dx] = 1 iff w == j*s + dx  (horizontal stride folded in)
        wi = np.arange(Wp)[:, None, None]
        ji = np.arange(Wo)[None, :, None]
        di = np.arange(fs)[None, None, :]
        one_hot = jnp.asarray((wi == ji * s + di).astype(np.float32))   # [Wp, Wo, fs]
        # T[dy, w*Cin+ci, j*Cout+co] = w4[dy, dx, ci, co] if w == j*s+dx else 0
        T5 = jnp.einsum("abic,wjb->awijc", w4, one_hot)     # [fs, Wp, Cin, Wo, Cout]
        T = T5.reshape(fs, Wp * Cin, Wo * Cout)

        inputs.append(T)
        inputs.append(gamma.reshape(1, Cout).astype(jnp.float32))
        inputs.append(beta.reshape(1, Cout).astype(jnp.float32))

        if not (l == 0 and stride_first == 2):
            Hp = Hin + 2 * pad
            scratch_shapes.append(pltpu.VMEM((N, Hp, Wp * Cin), jnp.float32))

    kernel = functools.partial(
        _multiconv_kernel, n=N, fs=fs, eps=eps,
        layer_shapes=tuple(layer_shapes), stride_first=stride_first)

    vmem = pl.BlockSpec(memory_space=pltpu.MemorySpace.VMEM)
    y = pl.pallas_call(
        kernel,
        out_shape=jax.ShapeDtypeStruct((N * Ho_out, Wo_out * C_out), jnp.float32),
        in_specs=[vmem] * len(inputs),
        out_specs=vmem,
        scratch_shapes=scratch_shapes,
        compiler_params=pltpu.CompilerParams(
            # Raise the scoped-VMEM ceiling (v5e default is only 16 MiB); the whole
            # fused block lives in VMEM. 32 MiB is safe on v5e/v6e/v7x.
            vmem_limit_bytes=32 * 1024 * 1024,
        ),
    )(*inputs)

    # lane-dense [N*Ho, Wo*C] -> NHWC -> NCHW (PyTorch convention)
    y = y.reshape(N, Ho_out, Wo_out, C_out)
    return jnp.transpose(y, (0, 3, 1, 2))


# ---------------------------------------------------------------------------
# MultiConv module (parameter construction mirrors the PyTorch defaults)
# ---------------------------------------------------------------------------
class MultiConv:
    def __init__(self, in_ch, out_ch, filter_size, conv_num, downsample_first=False,
                 key=jax.random.PRNGKey(0)):
        self.fs = filter_size
        self.downsample_first = downsample_first
        self.layers = []       # (w_pt, gamma, beta)
        self.biases = []       # kept only for the reference: cancelled by train-mode BN
        chans = [(in_ch, out_ch)] + [(out_ch, out_ch)] * (conv_num - 1)
        for ci, co in chans:
            key, kw, kb = jax.random.split(key, 3)
            fan_in = ci * filter_size * filter_size
            bound = 1.0 / np.sqrt(fan_in)
            w_pt = jax.random.uniform(kw, (co, ci, filter_size, filter_size),
                                      jnp.float32, -bound, bound)
            b = jax.random.uniform(kb, (co,), jnp.float32, -bound, bound)
            gamma = jnp.ones((co,), jnp.float32)   # BatchNorm2d affine defaults
            beta = jnp.zeros((co,), jnp.float32)
            self.layers.append((w_pt, gamma, beta))
            self.biases.append(b)

    def __call__(self, x_nchw):
        return multiconv_forward(x_nchw, self.layers, filter_size=self.fs,
                                 downsample_first=self.downsample_first)


# ---------------------------------------------------------------------------
# Pure-JAX reference (verification only; includes the conv bias like PyTorch)
# ---------------------------------------------------------------------------
def _ref_forward(module, x_nchw, eps=1e-5):
    x = x_nchw.astype(jnp.float32)
    fs = module.fs
    pad = (fs - 1) // 2
    for l, ((w_pt, gamma, beta), b) in enumerate(zip(module.layers, module.biases)):
        s = 2 if (l == 0 and module.downsample_first) else 1
        w_hwio = jnp.transpose(w_pt, (2, 3, 1, 0))
        y = lax.conv_general_dilated(
            x, w_hwio, window_strides=(s, s), padding=[(pad, pad), (pad, pad)],
            dimension_numbers=("NCHW", "HWIO", "NCHW"))
        y = y + b[None, :, None, None]
        mean = jnp.mean(y, axis=(0, 2, 3), keepdims=True)
        var = jnp.mean((y - mean) ** 2, axis=(0, 2, 3), keepdims=True)
        y = (y - mean) * lax.rsqrt(var + eps)
        y = y * gamma[None, :, None, None] + beta[None, :, None, None]
        x = jnp.maximum(y, 0.0)
    return x


if __name__ == "__main__":
    key = jax.random.PRNGKey(0)
    kx, kp1, kp2 = jax.random.split(key, 3)

    # Small shapes consistent with the module: batch=2, in_ch=4, spatial 16x16 (NCHW)
    x = jax.random.normal(kx, (2, 4, 16, 16), jnp.float32)

    # Stride-1 block (like the first encoder stage, at toy channel counts).
    m1 = MultiConv(in_ch=4, out_ch=8, filter_size=3, conv_num=2,
                   downsample_first=False, key=kp1)
    out1 = jax.block_until_ready(m1(x))
    ref1 = jax.block_until_ready(_ref_forward(m1, x))
    assert out1.shape == (2, 8, 16, 16), out1.shape
    np.testing.assert_allclose(np.asarray(out1), np.asarray(ref1), atol=2e-4, rtol=2e-4)

    # Downsampling block (stride-2 first conv, larger filter).
    m2 = MultiConv(in_ch=4, out_ch=8, filter_size=5, conv_num=2,
                   downsample_first=True, key=kp2)
    out2 = jax.block_until_ready(m2(x))
    ref2 = jax.block_until_ready(_ref_forward(m2, x))
    assert out2.shape == (2, 8, 8, 8), out2.shape
    np.testing.assert_allclose(np.asarray(out2), np.asarray(ref2), atol=2e-4, rtol=2e-4)

    # TODO(synk): UpMultiConv / full DeepPET assembly (bilinear upsample as two
    # interpolation matmuls) not ported in this round; only the reviewed MultiConv
    # building block is implemented.
    print("KERNEL_OK")
</pallas_src>

<mosaic_0001>
module attributes {stable_mosaic.version = 11 : i64} {
  func.func @_multiconv_kernel(%arg0: memref<2x16x64xf32, #tpu.memory_space<vmem>>, %arg1: memref<128x8xf32, #tpu.memory_space<vmem>>, %arg2: memref<8x128xf32, #tpu.memory_space<vmem>>, %arg3: memref<3x72x128xf32, #tpu.memory_space<vmem>>, %arg4: memref<1x8xf32, #tpu.memory_space<vmem>>, %arg5: memref<1x8xf32, #tpu.memory_space<vmem>>, %arg6: memref<3x144x128xf32, #tpu.memory_space<vmem>>, %arg7: memref<1x8xf32, #tpu.memory_space<vmem>>, %arg8: memref<1x8xf32, #tpu.memory_space<vmem>>, %arg9: memref<32x128xf32, #tpu.memory_space<vmem>>, %arg10: memref<2x18x72xf32, #tpu.memory_space<vmem>>, %arg11: memref<2x18x144xf32, #tpu.memory_space<vmem>>) attributes {dimension_semantics = [], scalar_prefetch = 0 : i64, scratch_operands = 2 : i64, tpu.core_type = #tpu.core_type<tc>} {
    %c0 = arith.constant 0 : index
    %c0_0 = arith.constant 0 : index
    %0 = vector.load %arg1[%c0, %c0_0] : memref<128x8xf32, #tpu.memory_space<vmem>>, vector<128x8xf32>
    %c0_1 = arith.constant 0 : index
    %c0_2 = arith.constant 0 : index
    %1 = vector.load %arg2[%c0_1, %c0_2] : memref<8x128xf32, #tpu.memory_space<vmem>>, vector<8x128xf32>
    %cst = arith.constant 0.000000e+00 : f32
    %2 = vector.broadcast %cst : f32 to vector<2x18x72xf32>
    %c0_3 = arith.constant 0 : index
    %c0_4 = arith.constant 0 : index
    %c0_5 = arith.constant 0 : index
    %3 = vector.load %arg10[%c0_3, %c0_4, %c0_5] : memref<2x18x72xf32, #tpu.memory_space<vmem>>, vector<2x18x72xf32>
    tpu.vector_store %arg10[%c0_3, %c0_4, %c0_5], %2 {strides = array<i32>} : memref<2x18x72xf32, #tpu.memory_space<vmem>>, vector<2x18x72xf32>,
    %c0_6 = arith.constant 0 : index
    %c0_7 = arith.constant 0 : index
    %c0_8 = arith.constant 0 : index
    %4 = vector.load %arg0[%c0_6, %c0_7, %c0_8] : memref<2x16x64xf32, #tpu.memory_space<vmem>>, vector<2x16x64xf32>
    %c0_9 = arith.constant 0 : index
    %c1 = arith.constant 1 : index
    %c4 = arith.constant 4 : index
    %5 = vector.load %arg10[%c0_9, %c1, %c4] : memref<2x18x72xf32, #tpu.memory_space<vmem>>, vector<2x16x64xf32>
    tpu.vector_store %arg10[%c0_9, %c1, %c4], %4 {strides = array<i32>} : memref<2x18x72xf32, #tpu.memory_space<vmem>>, vector<2x16x64xf32>,
    %c0_10 = arith.constant 0 : index
    %c0_11 = arith.constant 0 : index
    %c0_12 = arith.constant 0 : index
    %6 = vector.load %arg10[%c0_10, %c0_11, %c0_12] : memref<2x18x72xf32, #tpu.memory_space<vmem>>, vector<2x18x72xf32>
    %cst_13 = arith.constant 0.000000e+00 : f32
    %7 = vector.broadcast %cst_13 : f32 to vector<32x128xf32>
    %8 = vector.extract_strided_slice %6 {offsets = [0, 0, 0], sizes = [2, 16, 72], strides = [1, 1, 1]} : vector<2x18x72xf32> to vector<2x16x72xf32>
    %9 = vector.shape_cast %8 : vector<2x16x72xf32> to vector<32x72xf32>
    %c0_14 = arith.constant 0 : index
    %c0_15 = arith.constant 0 : index
    %c0_16 = arith.constant 0 : index
    %10 = vector.load %arg3[%c0_14, %c0_15, %c0_16] : memref<3x72x128xf32, #tpu.memory_space<vmem>>, vector<1x72x128xf32>
    %11 = vector.shape_cast %10 : vector<1x72x128xf32> to vector<72x128xf32>
    %cst_17 = arith.constant dense<0.000000e+00> : vector<32x128xf32>
    %12 = tpu.matmul %9, %11, %cst_17 {dimension_numbers = #tpu.dot_dimension_numbers<[1], [0], [0], [1], [0, 0, 1, 1], [], []>} : vector<32x72xf32>, vector<72x128xf32>, vector<32x128xf32> -> vector<32x128xf32>
    %13 = arith.addf %7, %12 : vector<32x128xf32>
    %14 = vector.extract_strided_slice %6 {offsets = [0, 1, 0], sizes = [2, 16, 72], strides = [1, 1, 1]} : vector<2x18x72xf32> to vector<2x16x72xf32>
    %15 = vector.shape_cast %14 : vector<2x16x72xf32> to vector<32x72xf32>
    %c1_18 = arith.constant 1 : index
    %c0_19 = arith.constant 0 : index
    %c0_20 = arith.constant 0 : index
    %16 = vector.load %arg3[%c1_18, %c0_19, %c0_20] : memref<3x72x128xf32, #tpu.memory_space<vmem>>, vector<1x72x128xf32>
    %17 = vector.shape_cast %16 : vector<1x72x128xf32> to vector<72x128xf32>
    %cst_21 = arith.constant dense<0.000000e+00> : vector<32x128xf32>
    %18 = tpu.matmul %15, %17, %cst_21 {dimension_numbers = #tpu.dot_dimension_numbers<[1], [0], [0], [1], [0, 0, 1, 1], [], []>} : vector<32x72xf32>, vector<72x128xf32>, vector<32x128xf32> -> vector<32x128xf32>
    %19 = arith.addf %13, %18 : vector<32x128xf32>
    %20 = vector.extract_strided_slice %6 {offsets = [0, 2, 0], sizes = [2, 16, 72], strides = [1, 1, 1]} : vector<2x18x72xf32> to vector<2x16x72xf32>
    %21 = vector.shape_cast %20 : vector<2x16x72xf32> to vector<32x72xf32>
    %c2 = arith.constant 2 : index
    %c0_22 = arith.constant 0 : index
    %c0_23 = arith.constant 0 : index
    %22 = vector.load %arg3[%c2, %c0_22, %c0_23] : memref<3x72x128xf32, #tpu.memory_space<vmem>>, vector<1x72x128xf32>
    %23 = vector.shape_cast %22 : vector<1x72x128xf32> to vector<72x128xf32>
    %cst_24 = arith.constant dense<0.000000e+00> : vector<32x128xf32>
    %24 = tpu.matmul %21, %23, %cst_24 {dimension_numbers = #tpu.dot_dimension_numbers<[1], [0], [0], [1], [0, 0, 1, 1], [], []>} : vector<32x72xf32>, vector<72x128xf32>, vector<32x128xf32> -> vector<32x128xf32>
    %25 = arith.addf %19, %24 : vector<32x128xf32>
    %cst_25 = arith.constant dense<0.000000e+00> : vector<128xf32>
    %26 = vector.multi_reduction <add>, %25, %cst_25 [0] : vector<32x128xf32> to vector<128xf32>
    %27 = vector.shape_cast %26 : vector<128xf32> to vector<1x128xf32>
    %28 = arith.mulf %25, %25 : vector<32x128xf32>
    %cst_26 = arith.constant dense<0.000000e+00> : vector<128xf32>
    %29 = vector.multi_reduction <add>, %28, %cst_26 [0] : vector<32x128xf32> to vector<128xf32>
    %30 = vector.shape_cast %29 : vector<128xf32> to vector<1x128xf32>
    %cst_27 = arith.constant dense<0.000000e+00> : vector<1x8xf32>
    %31 = tpu.matmul %27, %0, %cst_27 {dimension_numbers = #tpu.dot_dimension_numbers<[1], [0], [0], [1], [0, 0, 1, 1], [], []>} : vector<1x128xf32>, vector<128x8xf32>, vector<1x8xf32> -> vector<1x8xf32>
    %cst_28 = arith.constant 0.001953125 : f32
    %32 = vector.broadcast %cst_28 : f32 to vector<1x8xf32>
    %33 = arith.mulf %31, %32 : vector<1x8xf32>
    %cst_29 = arith.constant dense<0.000000e+00> : vector<1x8xf32>
    %34 = tpu.matmul %30, %0, %cst_29 {dimension_numbers = #tpu.dot_dimension_numbers<[1], [0], [0], [1], [0, 0, 1, 1], [], []>} : vector<1x128xf32>, vector<128x8xf32>, vector<1x8xf32> -> vector<1x8xf32>
    %cst_30 = arith.constant 0.001953125 : f32
    %35 = vector.broadcast %cst_30 : f32 to vector<1x8xf32>
    %36 = arith.mulf %34, %35 : vector<1x8xf32>
    %37 = arith.mulf %33, %33 : vector<1x8xf32>
    %38 = arith.subf %36, %37 : vector<1x8xf32>
    %cst_31 = arith.constant 0.000000e+00 : f32
    %39 = vector.broadcast %cst_31 : f32 to vector<1x8xf32>
    %40 = arith.maximumf %38, %39 : vector<1x8xf32>
    %c0_32 = arith.constant 0 : index
    %c0_33 = arith.constant 0 : index
    %41 = vector.load %arg4[%c0_32, %c0_33] : memref<1x8xf32, #tpu.memory_space<vmem>>, vector<1x8xf32>
    %cst_34 = arith.constant 9.99999974E-6 : f32
    %42 = vector.broadcast %cst_34 : f32 to vector<1x8xf32>
    %43 = arith.addf %40, %42 : vector<1x8xf32>
    %44 = math.rsqrt %43 : vector<1x8xf32>
    %45 = arith.mulf %41, %44 : vector<1x8xf32>
    %c0_35 = arith.constant 0 : index
    %c0_36 = arith.constant 0 : index
    %46 = vector.load %arg5[%c0_35, %c0_36] : memref<1x8xf32, #tpu.memory_space<vmem>>, vector<1x8xf32>
    %47 = arith.mulf %33, %45 : vector<1x8xf32>
    %48 = arith.subf %46, %47 : vector<1x8xf32>
    %cst_37 = arith.constant dense<0.000000e+00> : vector<1x128xf32>
    %49 = tpu.matmul %45, %1, %cst_37 {dimension_numbers = #tpu.dot_dimension_numbers<[1], [0], [0], [1], [0, 0, 1, 1], [], []>} : vector<1x8xf32>, vector<8x128xf32>, vector<1x128xf32> -> vector<1x128xf32>
    %cst_38 = arith.constant dense<0.000000e+00> : vector<1x128xf32>
    %50 = tpu.matmul %48, %1, %cst_38 {dimension_numbers = #tpu.dot_dimension_numbers<[1], [0], [0], [1], [0, 0, 1, 1], [], []>} : vector<1x8xf32>, vector<8x128xf32>, vector<1x128xf32> -> vector<1x128xf32>
    %51 = vector.broadcast %49 : vector<1x128xf32> to vector<32x128xf32>
    %52 = arith.mulf %25, %51 : vector<32x128xf32>
    %53 = vector.broadcast %50 : vector<1x128xf32> to vector<32x128xf32>
    %54 = arith.addf %52, %53 : vector<32x128xf32>
    %cst_39 = arith.constant 0.000000e+00 : f32
    %55 = vector.broadcast %cst_39 : f32 to vector<32x128xf32>
    %56 = arith.maximumf %54, %55 : vector<32x128xf32>
    %cst_40 = arith.constant 0.000000e+00 : f32
    %57 = vector.broadcast %cst_40 : f32 to vector<2x18x144xf32>
    %c0_41 = arith.constant 0 : index
    %c0_42 = arith.constant 0 : index
    %c0_43 = arith.constant 0 : index
    %58 = vector.load %arg11[%c0_41, %c0_42, %c0_43] : memref<2x18x144xf32, #tpu.memory_space<vmem>>, vector<2x18x144xf32>
    tpu.vector_store %arg11[%c0_41, %c0_42, %c0_43], %57 {strides = array<i32>} : memref<2x18x144xf32, #tpu.memory_space<vmem>>, vector<2x18x144xf32>,
    %59 = vector.shape_cast %56 : vector<32x128xf32> to vector<2x16x128xf32>
    %c0_44 = arith.constant 0 : index
    %c1_45 = arith.constant 1 : index
    %c8 = arith.constant 8 : index
    %60 = vector.load %arg11[%c0_44, %c1_45, %c8] : memref<2x18x144xf32, #tpu.memory_space<vmem>>, vector<2x16x128xf32>
    tpu.vector_store %arg11[%c0_44, %c1_45, %c8], %59 {strides = array<i32>} : memref<2x18x144xf32, #tpu.memory_space<vmem>>, vector<2x16x128xf32>,
    %c0_46 = arith.constant 0 : index
    %c0_47 = arith.constant 0 : index
    %c0_48 = arith.constant 0 : index
    %61 = vector.load %arg11[%c0_46, %c0_47, %c0_48] : memref<2x18x144xf32, #tpu.memory_space<vmem>>, vector<2x18x144xf32>
    %cst_49 = arith.constant 0.000000e+00 : f32
    %62 = vector.broadcast %cst_49 : f32 to vector<32x128xf32>
    %63 = vector.extract_strided_slice %61 {offsets = [0, 0, 0], sizes = [2, 16, 144], strides = [1, 1, 1]} : vector<2x18x144xf32> to vector<2x16x144xf32>
    %64 = vector.shape_cast %63 : vector<2x16x144xf32> to vector<32x144xf32>
    %c0_50 = arith.constant 0 : index
    %c0_51 = arith.constant 0 : index
    %c0_52 = arith.constant 0 : index
    %65 = vector.load %arg6[%c0_50, %c0_51, %c0_52] : memref<3x144x128xf32, #tpu.memory_space<vmem>>, vector<1x144x128xf32>
    %66 = vector.shape_cast %65 : vector<1x144x128xf32> to vector<144x128xf32>
    %cst_53 = arith.constant dense<0.000000e+00> : vector<32x128xf32>
    %67 = tpu.matmul %64, %66, %cst_53 {dimension_numbers = #tpu.dot_dimension_numbers<[1], [0], [0], [1], [0, 0, 1, 1], [], []>} : vector<32x144xf32>, vector<144x128xf32>, vector<32x128xf32> -> vector<32x128xf32>
    %68 = arith.addf %62, %67 : vector<32x128xf32>
    %69 = vector.extract_strided_slice %61 {offsets = [0, 1, 0], sizes = [2, 16, 144], strides = [1, 1, 1]} : vector<2x18x144xf32> to vector<2x16x144xf32>
    %70 = vector.shape_cast %69 : vector<2x16x144xf32> to vector<32x144xf32>
    %c1_54 = arith.constant 1 : index
    %c0_55 = arith.constant 0 : index
    %c0_56 = arith.constant 0 : index
    %71 = vector.load %arg6[%c1_54, %c0_55, %c0_56] : memref<3x144x128xf32, #tpu.memory_space<vmem>>, vector<1x144x128xf32>
    %72 = vector.shape_cast %71 : vector<1x144x128xf32> to vector<144x128xf32>
    %cst_57 = arith.constant dense<0.000000e+00> : vector<32x128xf32>
    %73 = tpu.matmul %70, %72, %cst_57 {dimension_numbers = #tpu.dot_dimension_numbers<[1], [0], [0], [1], [0, 0, 1, 1], [], []>} : vector<32x144xf32>, vector<144x128xf32>, vector<32x128xf32> -> vector<32x128xf32>
    %74 = arith.addf %68, %73 : vector<32x128xf32>
    %75 = vector.extract_strided_slice %61 {offsets = [0, 2, 0], sizes = [2, 16, 144], strides = [1, 1, 1]} : vector<2x18x144xf32> to vector<2x16x144xf32>
    %76 = vector.shape_cast %75 : vector<2x16x144xf32> to vector<32x144xf32>
    %c2_58 = arith.constant 2 : index
    %c0_59 = arith.constant 0 : index
    %c0_60 = arith.constant 0 : index
    %77 = vector.load %arg6[%c2_58, %c0_59, %c0_60] : memref<3x144x128xf32, #tpu.memory_space<vmem>>, vector<1x144x128xf32>
    %78 = vector.shape_cast %77 : vector<1x144x128xf32> to vector<144x128xf32>
    %cst_61 = arith.constant dense<0.000000e+00> : vector<32x128xf32>
    %79 = tpu.matmul %76, %78, %cst_61 {dimension_numbers = #tpu.dot_dimension_numbers<[1], [0], [0], [1], [0, 0, 1, 1], [], []>} : vector<32x144xf32>, vector<144x128xf32>, vector<32x128xf32> -> vector<32x128xf32>
    %80 = arith.addf %74, %79 : vector<32x128xf32>
    %cst_62 = arith.constant dense<0.000000e+00> : vector<128xf32>
    %81 = vector.multi_reduction <add>, %80, %cst_62 [0] : vector<32x128xf32> to vector<128xf32>
    %82 = vector.shape_cast %81 : vector<128xf32> to vector<1x128xf32>
    %83 = arith.mulf %80, %80 : vector<32x128xf32>
    %cst_63 = arith.constant dense<0.000000e+00> : vector<128xf32>
    %84 = vector.multi_reduction <add>, %83, %cst_63 [0] : vector<32x128xf32> to vector<128xf32>
    %85 = vector.shape_cast %84 : vector<128xf32> to vector<1x128xf32>
    %cst_64 = arith.constant dense<0.000000e+00> : vector<1x8xf32>
    %86 = tpu.matmul %82, %0, %cst_64 {dimension_numbers = #tpu.dot_dimension_numbers<[1], [0], [0], [1], [0, 0, 1, 1], [], []>} : vector<1x128xf32>, vector<128x8xf32>, vector<1x8xf32> -> vector<1x8xf32>
    %cst_65 = arith.constant 0.001953125 : f32
    %87 = vector.broadcast %cst_65 : f32 to vector<1x8xf32>
    %88 = arith.mulf %86, %87 : vector<1x8xf32>
    %cst_66 = arith.constant dense<0.000000e+00> : vector<1x8xf32>
    %89 = tpu.matmul %85, %0, %cst_66 {dimension_numbers = #tpu.dot_dimension_numbers<[1], [0], [0], [1], [0, 0, 1, 1], [], []>} : vector<1x128xf32>, vector<128x8xf32>, vector<1x8xf32> -> vector<1x8xf32>
    %cst_67 = arith.constant 0.001953125 : f32
    %90 = vector.broadcast %cst_67 : f32 to vector<1x8xf32>
    %91 = arith.mulf %89, %90 : vector<1x8xf32>
    %92 = arith.mulf %88, %88 : vector<1x8xf32>
    %93 = arith.subf %91, %92 : vector<1x8xf32>
    %cst_68 = arith.constant 0.000000e+00 : f32
    %94 = vector.broadcast %cst_68 : f32 to vector<1x8xf32>
    %95 = arith.maximumf %93, %94 : vector<1x8xf32>
    %c0_69 = arith.constant 0 : index
    %c0_70 = arith.constant 0 : index
    %96 = vector.load %arg7[%c0_69, %c0_70] : memref<1x8xf32, #tpu.memory_space<vmem>>, vector<1x8xf32>
    %cst_71 = arith.constant 9.99999974E-6 : f32
    %97 = vector.broadcast %cst_71 : f32 to vector<1x8xf32>
    %98 = arith.addf %95, %97 : vector<1x8xf32>
    %99 = math.rsqrt %98 : vector<1x8xf32>
    %100 = arith.mulf %96, %99 : vector<1x8xf32>
    %c0_72 = arith.constant 0 : index
    %c0_73 = arith.constant 0 : index
    %101 = vector.load %arg8[%c0_72, %c0_73] : memref<1x8xf32, #tpu.memory_space<vmem>>, vector<1x8xf32>
    %102 = arith.mulf %88, %100 : vector<1x8xf32>
    %103 = arith.subf %101, %102 : vector<1x8xf32>
    %cst_74 = arith.constant dense<0.000000e+00> : vector<1x128xf32>
    %104 = tpu.matmul %100, %1, %cst_74 {dimension_numbers = #tpu.dot_dimension_numbers<[1], [0], [0], [1], [0, 0, 1, 1], [], []>} : vector<1x8xf32>, vector<8x128xf32>, vector<1x128xf32> -> vector<1x128xf32>
    %cst_75 = arith.constant dense<0.000000e+00> : vector<1x128xf32>
    %105 = tpu.matmul %103, %1, %cst_75 {dimension_numbers = #tpu.dot_dimension_numbers<[1], [0], [0], [1], [0, 0, 1, 1], [], []>} : vector<1x8xf32>, vector<8x128xf32>, vector<1x128xf32> -> vector<1x128xf32>
    %106 = vector.broadcast %104 : vector<1x128xf32> to vector<32x128xf32>
    %107 = arith.mulf %80, %106 : vector<32x128xf32>
    %108 = vector.broadcast %105 : vector<1x128xf32> to vector<32x128xf32>
    %109 = arith.addf %107, %108 : vector<32x128xf32>
    %cst_76 = arith.constant 0.000000e+00 : f32
    %110 = vector.broadcast %cst_76 : f32 to vector<32x128xf32>
    %111 = arith.maximumf %109, %110 : vector<32x128xf32>
    %c0_77 = arith.constant 0 : index
    %c0_78 = arith.constant 0 : index
    %112 = vector.load %arg9[%c0_77, %c0_78] : memref<32x128xf32, #tpu.memory_space<vmem>>, vector<32x128xf32>
    tpu.vector_store %arg9[%c0_77, %c0_78], %111 {strides = array<i32>} : memref<32x128xf32, #tpu.memory_space<vmem>>, vector<32x128xf32>,
    return
  }
}

</mosaic_0001>

<llo_original>
// kernel: tpu_custom_call.1
$region0: #{tpu_custom_call.1}
  #allocation0 [shape = 'u32[]', space=smem, size = 0x4, offset = 0x4, fixed_abs, tag = 'smem constant byte address 0x4 - core index']
  #allocation1 [shape = 'u32[144,128]{1,0:T(1,128)}', space=vmem, size = 0x12000, scoped, tag = 'internal scratch']
  #allocation2 [shape = 'f32[2,18,72]{2,1,0:T(8,128)}', space=vmem, size = 0x6000, scoped, tag = 'scratch operand']
  #allocation3 [shape = 'f32[2,18,144]{2,1,0:T(8,128)}', space=vmem, size = 0xc000, scoped, tag = 'scratch operand']
  %s0 = inlined_call_operand.vmem [shape: f32[2,16,64], index: 0, kind: input, shape index: {}]
  %s1 = inlined_call_operand.vmem [shape: f32[128,8], index: 1, kind: input, shape index: {}]
  %s2 = inlined_call_operand.vmem [shape: f32[8,128], index: 2, kind: input, shape index: {}]
  %s3 = inlined_call_operand.hbm [shape: f32[3,72,128], index: 3, kind: input, shape index: {}]
  %s4 = inlined_call_operand.vmem [shape: f32[1,8], index: 4, kind: input, shape index: {}]
  %s5 = inlined_call_operand.vmem [shape: f32[1,8], index: 5, kind: input, shape index: {}]
  %s6 = inlined_call_operand.hbm [shape: f32[3,144,128], index: 6, kind: input, shape index: {}]
  %s7 = inlined_call_operand.vmem [shape: f32[1,8], index: 7, kind: input, shape index: {}]
  %s8 = inlined_call_operand.vmem [shape: f32[1,8], index: 8, kind: input, shape index: {}]
  %s9 = inlined_call_operand.hbm [shape: f32[32,128], index: 9, kind: output, shape index: {}]
  %s10 = sld [smem:[#allocation0]]
  $region54: #{tpu_custom_call.1} parent=0
    _
  %s12 = ssub.s32 1, %s10
  %s13 = scalar_select 0, %s12, %s10
  $region1: #{tpu_custom_call.1} parent=0
    #allocation4 [shape = 'u8[110592]{0}', space=vmem, size = 0x1b000, scoped, tag = 'input window, operand 3, single buffered']
    #allocation5 [shape = 's32[1]{0}', space=sflag, size = 0x4, scoped, tag = 'scoped memory for tpu_custom_call.1']
    #allocation6 [shape = 's32[1]{0}', space=sflag, size = 0x4, scoped, tag = 'scoped memory for tpu_custom_call.1']
    #allocation7 [shape = 'u8[221184]{0}', space=vmem, size = 0x36000, scoped, tag = 'input window, operand 6, single buffered']
    #allocation8 [shape = 's32[1]{0}', space=sflag, size = 0x4, scoped, tag = 'scoped memory for tpu_custom_call.1']
    #allocation9 [shape = 'u8[16384]{0}', space=vmem, size = 0x4000, scoped, tag = 'output window, operand 0, single buffered']
    %14 = vsyncpa [#allocation5], 0
    %15 = vsyncpa [#allocation8], 0
    %16 = vsyncpa [#allocation6], 0
    // Predicated region
    $region2: #{tpu_custom_call.1} parent=1 // pred_check
      _
    $region3: #{tpu_custom_call.1} parent=1 // pred_check_branch
      %18 = sbr.rel (0) target = $region5
    $region4: #{tpu_custom_call.1} parent=1 // pred_region
      _
    $region5: #{tpu_custom_call.1} parent=1 // pred_fallthru
      _
    // Predicated region
    $region6: #{tpu_custom_call.1} parent=1 // pred_check
      _
    $region7: #{tpu_custom_call.1} parent=1 // pred_check_branch
      %20 = sbr.rel (0) target = $region9
    $region8: #{tpu_custom_call.1} parent=1 // pred_region
      _
    $region9: #{tpu_custom_call.1} parent=1 // pred_fallthru
      _
    // Predicated region
    $region10: #{tpu_custom_call.1} parent=1 // pred_check
      _
    $region11: #{tpu_custom_call.1} parent=1 // pred_check_branch
      %22 = sbr.rel (0) target = $region13
    $region12: #{tpu_custom_call.1} parent=1 // pred_region
      _
    $region13: #{tpu_custom_call.1} parent=1 // pred_fallthru
      _
    // Predicated region
    $region14: #{tpu_custom_call.1} parent=1 // pred_check
      _
    $region15: #{tpu_custom_call.1} parent=1 // pred_check_branch
      %24 = sbr.rel (0) target = $region17
    $region16: #{tpu_custom_call.1} parent=1 // pred_region
      %s26 = ssub.s32 3456, 3456
      %27 = vsyncadd [#allocation5], %s26
      %s28 = sshll.u32 [#allocation4], 4
      %s29 = int_to_ptr.vmem [resolvable:$true] %s28
      %34 = dma.hbm_to_vmem [thread:$0]  %s3, 3456, %s29, [#allocation5], 128, 128, 8
    $region17: #{tpu_custom_call.1} parent=1 // pred_fallthru
      _
    // Predicated region
    $region18: #{tpu_custom_call.1} parent=1 // pred_check
      _
    $region19: #{tpu_custom_call.1} parent=1 // pred_check_branch
      %36 = sbr.rel (0) target = $region21
    $region20: #{tpu_custom_call.1} parent=1 // pred_region
      _
    $region21: #{tpu_custom_call.1} parent=1 // pred_fallthru
      _
    // Predicated region
    $region22: #{tpu_custom_call.1} parent=1 // pred_check
      _
    $region23: #{tpu_custom_call.1} parent=1 // pred_check_branch
      %38 = sbr.rel (0) target = $region25
    $region24: #{tpu_custom_call.1} parent=1 // pred_region
      _
    $region25: #{tpu_custom_call.1} parent=1 // pred_fallthru
      _
    // Predicated region
    $region26: #{tpu_custom_call.1} parent=1 // pred_check
      _
    $region27: #{tpu_custom_call.1} parent=1 // pred_check_branch
      %40 = sbr.rel (0) target = $region29
    $region28: #{tpu_custom_call.1} parent=1 // pred_region
      %s42 = ssub.s32 6912, 6912
      %43 = vsyncadd [#allocation8], %s42
      %s44 = sshll.u32 [#allocation7], 4
      %s45 = int_to_ptr.vmem [resolvable:$true] %s44
      %50 = dma.hbm_to_vmem [thread:$0]  %s6, 6912, %s45, [#allocation8], 128, 128, 8
    $region29: #{tpu_custom_call.1} parent=1 // pred_fallthru
      _
    // Predicated region
    $region30: #{tpu_custom_call.1} parent=1 // pred_check
      _
    $region31: #{tpu_custom_call.1} parent=1 // pred_check_branch
      %52 = sbr.rel (0) target = $region33
    $region32: #{tpu_custom_call.1} parent=1 // pred_region
      _
    $region33: #{tpu_custom_call.1} parent=1 // pred_fallthru
      _
    // Predicated region
    $region34: #{tpu_custom_call.1} parent=1 // pred_check
      _
    $region35: #{tpu_custom_call.1} parent=1 // pred_check_branch
      %54 = sbr.rel (0) target = $region37
    $region36: #{tpu_custom_call.1} parent=1 // pred_region
      _
    $region37: #{tpu_custom_call.1} parent=1 // pred_fallthru
      _
    // Predicated region
    $region38: #{tpu_custom_call.1} parent=1 // pred_check
      _
    $region39: #{tpu_custom_call.1} parent=1 // pred_check_branch
      %56 = sbr.rel (0) target = $region41
    $region40: #{tpu_custom_call.1} parent=1 // pred_region
      %57 = dma.done [#allocation5], 3456
    $region41: #{tpu_custom_call.1} parent=1 // pred_fallthru
      _
    // Predicated region
    $region42: #{tpu_custom_call.1} parent=1 // pred_check
      _
    $region43: #{tpu_custom_call.1} parent=1 // pred_check_branch
      %59 = sbr.rel (0) target = $region45
    $region44: #{tpu_custom_call.1} parent=1 // pred_region
      %60 = dma.done [#allocation8], 6912
    $region45: #{tpu_custom_call.1} parent=1 // pred_fallthru
      _
    %v61 = vld [vmem:[%s1] sm:$0xff]
    %v62 = vld [vmem:[%s1 + $0x8] sm:$0xff]
    %v63 = vld [vmem:[%s1 + $0x10] sm:$0xff]
    %v64 = vld [vmem:[%s1 + $0x18] sm:$0xff]
    %v65 = vld [vmem:[%s1 + $0x20] sm:$0xff]
    %v66 = vld [vmem:[%s1 + $0x28] sm:$0xff]
    %v67 = vld [vmem:[%s1 + $0x30] sm:$0xff]
    %v68 = vld [vmem:[%s1 + $0x38] sm:$0xff]
    %v69 = vld [vmem:[%s1 + $0x40] sm:$0xff]
    %v70 = vld [vmem:[%s1 + $0x48] sm:$0xff]
    %v71 = vld [vmem:[%s1 + $0x50] sm:$0xff]
    %v72 = vld [vmem:[%s1 + $0x58] sm:$0xff]
    %v73 = vld [vmem:[%s1 + $0x60] sm:$0xff]
    %v74 = vld [vmem:[%s1 + $0x68] sm:$0xff]
    %v75 = vld [vmem:[%s1 + $0x70] sm:$0xff]
    %v76 = vld [vmem:[%s1 + $0x78] sm:$0xff]
    %v77 = vld [vmem:[%s2] sm:$0xff]
    %vm78 = vcmask 588800
    %79 = vst.msk [vmem:[#allocation2] sm:$0xff] %vm78, 0.0
    %80 = vst.msk [vmem:[#allocation2 + $0x8] sm:$0xff] %vm78, 0.0
    %vm81 = vcmask 582656
    %82 = vst.msk [vmem:[#allocation2 + $0x10] sm:$0x3] %vm81, 0.0
    %83 = vst.msk [vmem:[#allocation2 + $0x18] sm:$0xff] %vm78, 0.0
    %84 = vst.msk [vmem:[#allocation2 + $0x20] sm:$0xff] %vm78, 0.0
    %85 = vst.msk [vmem:[#allocation2 + $0x28] sm:$0x3] %vm81, 0.0
    %v86 = vld [vmem:[%s0] sm:$0xff]
    %v87 = vld [vmem:[%s0 + $0x8] sm:$0xff]
    %v88 = vld [vmem:[%s0 + $0x10] sm:$0xff]
    %v89 = vld [vmem:[%s0 + $0x18] sm:$0xff]
    %94 = vrot.lane.b32.xlu0 %v86, 4
    %v95 = vpop.permute.xlu0 %94
    %96 = vrot.lane.b32.xlu0 %v87, 4
    %v97 = vpop.permute.xlu0 %96
    %98 = vrot.lane.b32.xlu0 %v88, 4
    %v99 = vpop.permute.xlu0 %98
    %100 = vrot.lane.b32.xlu0 %v89, 4
    %v101 = vpop.permute.xlu0 %100
    %vm106 = vcmask 556064
    %107 = vst.msk [vmem:[#allocation2 + $0x1] sm:$0xff] %vm106, %v95
    %108 = vst.msk [vmem:[#allocation2 + $0x9] sm:$0xff] %vm106, %v97
    %109 = vst.msk [vmem:[#allocation2 + $0x19] sm:$0xff] %vm106, %v99
    %110 = vst.msk [vmem:[#allocation2 + $0x21] sm:$0xff] %vm106, %v101
    %v111 = vld [vmem:[#allocation2] sm:$0xff]
    %v112 = vld [vmem:[#allocation2 + $0x8] sm:$0xff]
    %v113 = vld [vmem:[#allocation2 + $0x10] sm:$0x3]
    %v114 = vld [vmem:[#allocation2 + $0x18] sm:$0xff]
    %v115 = vld [vmem:[#allocation2 + $0x20] sm:$0xff]
    %v116 = vld [vmem:[#allocation2 + $0x28] sm:$0x3]
    %v117 = vld [vmem:[#allocation4] sm:$0xff]
    %v118 = vld [vmem:[#allocation4 + $0x8] sm:$0xff]
    %v119 = vld [vmem:[#allocation4 + $0x10] sm:$0xff]
    %v120 = vld [vmem:[#allocation4 + $0x18] sm:$0xff]
    %v121 = vld [vmem:[#allocation4 + $0x20] sm:$0xff]
    %v122 = vld [vmem:[#allocation4 + $0x28] sm:$0xff]
    %v123 = vld [vmem:[#allocation4 + $0x30] sm:$0xff]
    %v124 = vld [vmem:[#allocation4 + $0x38] sm:$0xff]
    %v125 = vld [vmem:[#allocation4 + $0x40] sm:$0xff]
    %vm132 = vcmask 1046528
    %v133 = vrot.slane %v111, 1
    %v134 = vrot.slane %v112, 1
    %v135 = vsel %vm132, %v133, %v134
    %v136 = vrot.slane %v113, 1
    %v137 = vsel %vm132, %v134, %v136
    %v138 = vrot.slane %v114, 1
    %v139 = vrot.slane %v115, 1
    %v140 = vsel %vm132, %v138, %v139
    %v141 = vrot.slane %v116, 1
    %v142 = vsel %vm132, %v139, %v141
    %s143 = scalar_lea.vmem [#allocation4], 72
    %v144 = vld [vmem:[%s143] sm:$0xff]
    %v145 = vld [vmem:[%s143 + $0x8] sm:$0xff]
    %v146 = vld [vmem:[%s143 + $0x10] sm:$0xff]
    %v147 = vld [vmem:[%s143 + $0x18] sm:$0xff]
    %v148 = vld [vmem:[%s143 + $0x20] sm:$0xff]
    %v149 = vld [vmem:[%s143 + $0x28] sm:$0xff]
    %v150 = vld [vmem:[%s143 + $0x30] sm:$0xff]
    %v151 = vld [vmem:[%s143 + $0x38] sm:$0xff]
    %v152 = vld [vmem:[%s143 + $0x40] sm:$0xff]
    %v153 = vsel %vm78, %v135, 0
    %v155 = vsel %vm78, %v137, 0
    %v157 = vsel %vm78, %v140, 0
    %v159 = vsel %vm78, %v142, 0
    %161 = vmatprep.subr.mxu0 0.0
    %162 = vmatpush1.msra.mxu0 %v144
    %163 = vmatprep.subr.mxu0 0.0
    %164 = vmatpush1.msra.mxu0 %v145
    %165 = vmatprep.subr.mxu0 0.0
    %166 = vmatpush1.msra.mxu0 %v146
    %167 = vmatprep.subr.mxu0 0.0
    %168 = vmatpush1.msra.mxu0 %v147
    %169 = vmatprep.subr.mxu0 0.0
    %170 = vmatpush1.msra.mxu0 %v148
    %171 = vmatprep.subr.mxu0 0.0
    %172 = vmatpush1.msra.mxu0 %v149
    %173 = vmatprep.subr.mxu0 0.0
    %174 = vmatpush1.msra.mxu0 %v150
    %175 = vmatprep.subr.mxu0 0.0
    %176 = vmatpush1.msra.mxu0 %v151
    %177 = vmatprep.subr.mxu0 0.0
    %178 = vmatpush1.msra.mxu0 %v152
    %179 = vmatprep.subr.mxu0 0.0
    %180 = vmatpush1.msra.mxu0 0.0
    %181 = vmatprep.subr.mxu0 0.0
    %182 = vmatpush1.msra.mxu0 0.0
    %183 = vmatprep.subr.mxu0 0.0
    %184 = vmatpush1.msra.mxu0 0.0
    %185 = vmatprep.subr.mxu0 0.0
    %186 = vmatpush1.msra.mxu0 0.0
    %187 = vmatprep.subr.mxu0 0.0
    %188 = vmatpush1.msra.mxu0 0.0
    %189 = vmatprep.subr.mxu0 0.0
    %190 = vmatpush1.msra.mxu0 0.0
    %191 = vmatprep.subr.mxu0 0.0
    %192 = vmatpush1.msra.mxu0 0.0
    %193 = vmatprep.subr.mxu0 0.0
    %194 = vmatpush1.msra.mxu0 0.0
    %195 = vmatprep.subr.mxu0 0.0
    %196 = vmatpush1.msra.mxu0 0.0
    %197 = vmatprep.subr.mxu0 0.0
    %198 = vmatpush1.msra.mxu0 0.0
    %199 = vmatprep.subr.mxu0 0.0
    %200 = vmatpush1.msra.mxu0 0.0
    %201 = vmatprep.subr.mxu0 0.0
    %202 = vmatpush1.msra.mxu0 0.0
    %203 = vmatprep.subr.mxu0 0.0
    %204 = vmatpush1.msra.mxu0 0.0
    %205 = vmatprep.subr.mxu0 0.0
    %206 = vmatpush1.msra.mxu0 0.0
    %207 = vmatprep.subr.mxu0 0.0
    %208 = vmatpush1.msra.mxu0 0.0
    %209 = vmatprep.subr.mxu0 0.0
    %210 = vmatpush1.msra.mxu0 0.0
    %211 = vmatprep.subr.mxu0 0.0
    %212 = vmatpush1.msra.mxu0 0.0
    %213 = vmatprep.subr.mxu0 0.0
    %214 = vmatpush1.msra.mxu0 0.0
    %215 = vmatprep.subr.mxu0 0.0
    %216 = vmatpush1.msra.mxu0 0.0
    %217 = vmatprep.subr.mxu0 0.0
    %218 = vmatpush1.msra.mxu0 0.0
    %219 = vmatprep.subr.mxu0 0.0
    %220 = vmatpush1.msra.mxu0 0.0
    %221 = vmatprep.subr.mxu0 0.0
    %222 = vmatpush1.msra.mxu0 0.0
    %223 = vmatprep.subr.mxu0 0.0
    %224 = vmatpush1.msra.mxu0 0.0
    %225 = vmatprep.mubr.f32.mxu0 0.0
    %226 = vmatmul.mubr.f32.gmra.mrb[0].mxu0 %v153
    %v227 = vpop.f32.mrb[0].mxu0
    %v228 = vadd.f32 0.0, %v227
    %v229 = vpop.f32.mrb[0].mxu0
    %230 = vmatprep.mubr.f32.mxu0 0.0
    %231 = vmatmul.mubr.f32.gmra.mrb[0].mxu0 %v155
    %v232 = vpop.f32.mrb[0].mxu0
    %v233 = vadd.f32 0.0, %v232
    %v234 = vpop.f32.mrb[0].mxu0
    %235 = vmatprep.mubr.f32.mxu0 0.0
    %236 = vmatmul.mubr.f32.gmra.mrb[0].mxu0 %v157
    %v237 = vpop.f32.mrb[0].mxu0
    %v238 = vadd.f32 0.0, %v237
    %v239 = vpop.f32.mrb[0].mxu0
    %240 = vmatprep.mubr.f32.mxu0 0.0
    %241 = vmatmul.mubr.f32.gmra.mrb[0].mxu0 %v159
    %v242 = vpop.f32.mrb[0].mxu0
    %v243 = vadd.f32 0.0, %v242
    %v244 = vpop.f32.mrb[0].mxu0
    %245 = vdwg.mxu0
    %v246 = vsel %vm78, %v111, 0
    %v248 = vsel %vm78, %v112, 0
    %v250 = vsel %vm78, %v114, 0
    %v252 = vsel %vm78, %v115, 0
    %254 = vmatprep.subr.mxu0 0.0
    %255 = vmatpush1.msra.mxu0 %v117
    %256 = vmatprep.subr.mxu0 0.0
    %257 = vmatpush1.msra.mxu0 %v118
    %258 = vmatprep.subr.mxu0 0.0
    %259 = vmatpush1.msra.mxu0 %v119
    %260 = vmatprep.subr.mxu0 0.0
    %261 = vmatpush1.msra.mxu0 %v120
    %262 = vmatprep.subr.mxu0 0.0
    %263 = vmatpush1.msra.mxu0 %v121
    %264 = vmatprep.subr.mxu0 0.0
    %265 = vmatpush1.msra.mxu0 %v122
    %266 = vmatprep.subr.mxu0 0.0
    %267 = vmatpush1.msra.mxu0 %v123
    %268 = vmatprep.subr.mxu0 0.0
    %269 = vmatpush1.msra.mxu0 %v124
    %270 = vmatprep.subr.mxu0 0.0
    %271 = vmatpush1.msra.mxu0 %v125
    %272 = vmatprep.subr.mxu0 0.0
    %273 = vmatpush1.msra.mxu0 0.0
    %274 = vmatprep.subr.mxu0 0.0
    %275 = vmatpush1.msra.mxu0 0.0
    %276 = vmatprep.subr.mxu0 0.0
    %277 = vmatpush1.msra.mxu0 0.0
    %278 = vmatprep.subr.mxu0 0.0
    %279 = vmatpush1.msra.mxu0 0.0
    %280 = vmatprep.subr.mxu0 0.0
    %281 = vmatpush1.msra.mxu0 0.0
    %282 = vmatprep.subr.mxu0 0.0
    %283 = vmatpush1.msra.mxu0 0.0
    %284 = vmatprep.subr.mxu0 0.0
    %285 = vmatpush1.msra.mxu0 0.0
    %286 = vmatprep.subr.mxu0 0.0
    %287 = vmatpush1.msra.mxu0 0.0
    %288 = vmatprep.subr.mxu0 0.0
    %289 = vmatpush1.msra.mxu0 0.0
    %290 = vmatprep.subr.mxu0 0.0
    %291 = vmatpush1.msra.mxu0 0.0
    %292 = vmatprep.subr.mxu0 0.0
    %293 = vmatpush1.msra.mxu0 0.0
    %294 = vmatprep.subr.mxu0 0.0
    %295 = vmatpush1.msra.mxu0 0.0
    %296 = vmatprep.subr.mxu0 0.0
    %297 = vmatpush1.msra.mxu0 0.0
    %298 = vmatprep.subr.mxu0 0.0
    %299 = vmatpush1.msra.mxu0 0.0
    %300 = vmatprep.subr.mxu0 0.0
    %301 = vmatpush1.msra.mxu0 0.0
    %302 = vmatprep.subr.mxu0 0.0
    %303 = vmatpush1.msra.mxu0 0.0
    %304 = vmatprep.subr.mxu0 0.0
    %305 = vmatpush1.msra.mxu0 0.0
    %306 = vmatprep.subr.mxu0 0.0
    %307 = vmatpush1.msra.mxu0 0.0
    %308 = vmatprep.subr.mxu0 0.0
    %309 = vmatpush1.msra.mxu0 0.0
    %310 = vmatprep.subr.mxu0 0.0
    %311 = vmatpush1.msra.mxu0 0.0
    %312 = vmatprep.subr.mxu0 0.0
    %313 = vmatpush1.msra.mxu0 0.0
    %314 = vmatprep.subr.mxu0 0.0
    %315 = vmatpush1.msra.mxu0 0.0
    %316 = vmatprep.subr.mxu0 0.0
    %317 = vmatpush1.msra.mxu0 0.0
    %318 = vmatprep.mubr.f32.mxu0 0.0
    %319 = vmatmul.mubr.f32.gmra.mrb[0].mxu0 %v246
    %v320 = vpop.f32.mrb[0].mxu0
    %v321 = vadd.f32 %v228, %v320
    %v322 = vpop.f32.mrb[0].mxu0
    %323 = vmatprep.mubr.f32.mxu0 0.0
    %324 = vmatmul.mubr.f32.gmra.mrb[0].mxu0 %v248
    %v325 = vpop.f32.mrb[0].mxu0
    %v326 = vadd.f32 %v233, %v325
    %v327 = vpop.f32.mrb[0].mxu0
    %328 = vmatprep.mubr.f32.mxu0 0.0
    %329 = vmatmul.mubr.f32.gmra.mrb[0].mxu0 %v250
    %v330 = vpop.f32.mrb[0].mxu0
    %v331 = vadd.f32 %v238, %v330
    %v332 = vpop.f32.mrb[0].mxu0
    %333 = vmatprep.mubr.f32.mxu0 0.0
    %334 = vmatmul.mubr.f32.gmra.mrb[0].mxu0 %v252
    %v335 = vpop.f32.mrb[0].mxu0
    %v336 = vadd.f32 %v243, %v335
    %v337 = vpop.f32.mrb[0].mxu0
    %338 = vdwg.mxu0
    %vm339 = vcmask 1045504
    %v340 = vrot.slane %v111, 2
    %v341 = vrot.slane %v112, 2
    %v342 = vsel %vm339, %v340, %v341
    %v343 = vrot.slane %v113, 2
    %v344 = vsel %vm339, %v341, %v343
    %v345 = vrot.slane %v114, 2
    %v346 = vrot.slane %v115, 2
    %v347 = vsel %vm339, %v345, %v346
    %v348 = vrot.slane %v116, 2
    %v349 = vsel %vm339, %v346, %v348
    %s350 = scalar_lea.vmem [#allocation4], 144
    %v351 = vld [vmem:[%s350] sm:$0xff]
    %v352 = vld [vmem:[%s350 + $0x8] sm:$0xff]
    %v353 = vld [vmem:[%s350 + $0x10] sm:$0xff]
    %v354 = vld [vmem:[%s350 + $0x18] sm:$0xff]
    %v355 = vld [vmem:[%s350 + $0x20] sm:$0xff]
    %v356 = vld [vmem:[%s350 + $0x28] sm:$0xff]
    %v357 = vld [vmem:[%s350 + $0x30] sm:$0xff]
    %v358 = vld [vmem:[%s350 + $0x38] sm:$0xff]
    %v359 = vld [vmem:[%s350 + $0x40] sm:$0xff]
    %v360 = vsel %vm78, %v342, 0
    %v362 = vsel %vm78, %v344, 0
    %v364 = vsel %vm78, %v347, 0
    %v366 = vsel %vm78, %v349, 0
    %368 = vmatprep.subr.mxu0 0.0
    %369 = vmatpush1.msra.mxu0 %v351
    %370 = vmatprep.subr.mxu0 0.0
    %371 = vmatpush1.msra.mxu0 %v352
    %372 = vmatprep.subr.mxu0 0.0
    %373 = vmatpush1.msra.mxu0 %v353
    %374 = vmatprep.subr.mxu0 0.0
    %375 = vmatpush1.msra.mxu0 %v354
    %376 = vmatprep.subr.mxu0 0.0
    %377 = vmatpush1.msra.mxu0 %v355
    %378 = vmatprep.subr.mxu0 0.0
    %379 = vmatpush1.msra.mxu0 %v356
    %380 = vmatprep.subr.mxu0 0.0
    %381 = vmatpush1.msra.mxu0 %v357
    %382 = vmatprep.subr.mxu0 0.0
    %383 = vmatpush1.msra.mxu0 %v358
    %384 = vmatprep.subr.mxu0 0.0
    %385 = vmatpush1.msra.mxu0 %v359
    %386 = vmatprep.subr.mxu0 0.0
    %387 = vmatpush1.msra.mxu0 0.0
    %388 = vmatprep.subr.mxu0 0.0
    %389 = vmatpush1.msra.mxu0 0.0
    %390 = vmatprep.subr.mxu0 0.0
    %391 = vmatpush1.msra.mxu0 0.0
    %392 = vmatprep.subr.mxu0 0.0
    %393 = vmatpush1.msra.mxu0 0.0
    %394 = vmatprep.subr.mxu0 0.0
    %395 = vmatpush1.msra.mxu0 0.0
    %396 = vmatprep.subr.mxu0 0.0
    %397 = vmatpush1.msra.mxu0 0.0
    %398 = vmatprep.subr.mxu0 0.0
    %399 = vmatpush1.msra.mxu0 0.0
    %400 = vmatprep.subr.mxu0 0.0
    %401 = vmatpush1.msra.mxu0 0.0
    %402 = vmatprep.subr.mxu0 0.0
    %403 = vmatpush1.msra.mxu0 0.0
    %404 = vmatprep.subr.mxu0 0.0
    %405 = vmatpush1.msra.mxu0 0.0
    %406 = vmatprep.subr.mxu0 0.0
    %407 = vmatpush1.msra.mxu0 0.0
    %408 = vmatprep.subr.mxu0 0.0
    %409 = vmatpush1.msra.mxu0 0.0
    %410 = vmatprep.subr.mxu0 0.0
    %411 = vmatpush1.msra.mxu0 0.0
    %412 = vmatprep.subr.mxu0 0.0
    %413 = vmatpush1.msra.mxu0 0.0
    %414 = vmatprep.subr.mxu0 0.0
    %415 = vmatpush1.msra.mxu0 0.0
    %416 = vmatprep.subr.mxu0 0.0
    %417 = vmatpush1.msra.mxu0 0.0
    %418 = vmatprep.subr.mxu0 0.0
    %419 = vmatpush1.msra.mxu0 0.0
    %420 = vmatprep.subr.mxu0 0.0
    %421 = vmatpush1.msra.mxu0 0.0
    %422 = vmatprep.subr.mxu0 0.0
    %423 = vmatpush1.msra.mxu0 0.0
    %424 = vmatprep.subr.mxu0 0.0
    %425 = vmatpush1.msra.mxu0 0.0
    %426 = vmatprep.subr.mxu0 0.0
    %427 = vmatpush1.msra.mxu0 0.0
    %428 = vmatprep.subr.mxu0 0.0
    %429 = vmatpush1.msra.mxu0 0.0
    %430 = vmatprep.subr.mxu0 0.0
    %431 = vmatpush1.msra.mxu0 0.0
    %432 = vmatprep.mubr.f32.mxu0 0.0
    %433 = vmatmul.mubr.f32.gmra.mrb[0].mxu0 %v360
    %v434 = vpop.f32.mrb[0].mxu0
    %v435 = vadd.f32 0.0, %v434
    %v436 = vpop.f32.mrb[0].mxu0
    %437 = vmatprep.mubr.f32.mxu0 0.0
    %438 = vmatmul.mubr.f32.gmra.mrb[0].mxu0 %v362
    %v439 = vpop.f32.mrb[0].mxu0
    %v440 = vadd.f32 0.0, %v439
    %v441 = vpop.f32.mrb[0].mxu0
    %442 = vmatprep.mubr.f32.mxu0 0.0
    %443 = vmatmul.mubr.f32.gmra.mrb[0].mxu0 %v364
    %v444 = vpop.f32.mrb[0].mxu0
    %v445 = vadd.f32 0.0, %v444
    %v446 = vpop.f32.mrb[0].mxu0
    %447 = vmatprep.mubr.f32.mxu0 0.0
    %448 = vmatmul.mubr.f32.gmra.mrb[0].mxu0 %v366
    %v449 = vpop.f32.mrb[0].mxu0
    %v450 = vadd.f32 0.0, %v449
    %v451 = vpop.f32.mrb[0].mxu0
    %452 = vdwg.mxu0
    %v453 = vadd.f32 %v321, %v435
    %v454 = vadd.f32 %v326, %v440
    %v455 = vadd.f32 %v331, %v445
    %v456 = vadd.f32 %v336, %v450
    %v457 = vadd.f32 %v453, %v454
    %v458 = vadd.f32 %v457, %v455
    %v459 = vadd.f32 %v458, %v456
    %v460 = vrot.slane %v459, 4
    %v461 = vadd.f32 %v459, %v460
    %v462 = vrot.slane %v461, 2
    %v463 = vadd.f32 %v461, %v462
    %v464 = vrot.slane %v463, 1
    %v465 = vadd.f32 %v463, %v464
    %v466 = vmul.f32 %v453, %v453
    %v467 = vmul.f32 %v454, %v454
    %v468 = vmul.f32 %v455, %v455
    %v469 = vmul.f32 %v456, %v456
    %v470 = vadd.f32 %v466, %v467
    %v471 = vadd.f32 %v470, %v468
    %v472 = vadd.f32 %v471, %v469
    %v473 = vrot.slane %v472, 4
    %v474 = vadd.f32 %v472, %v473
    %v475 = vrot.slane %v474, 2
    %v476 = vadd.f32 %v474, %v475
    %v477 = vrot.slane %v476, 1
    %v478 = vadd.f32 %v476, %v477
    %479 = vmatprep.subr.mxu0 0.0
    %480 = vmatpush1.msra.mxu0 %v61
    %481 = vmatprep.subr.mxu0 0.0
    %482 = vmatpush1.msra.mxu0 %v62
    %483 = vmatprep.subr.mxu0 0.0
    %484 = vmatpush1.msra.mxu0 %v63
    %485 = vmatprep.subr.mxu0 0.0
    %486 = vmatpush1.msra.mxu0 %v64
    %487 = vmatprep.subr.mxu0 0.0
    %488 = vmatpush1.msra.mxu0 %v65
    %489 = vmatprep.subr.mxu0 0.0
    %490 = vmatpush1.msra.mxu0 %v66
    %491 = vmatprep.subr.mxu0 0.0
    %492 = vmatpush1.msra.mxu0 %v67
    %493 = vmatprep.subr.mxu0 0.0
    %494 = vmatpush1.msra.mxu0 %v68
    %495 = vmatprep.subr.mxu0 0.0
    %496 = vmatpush1.msra.mxu0 %v69
    %497 = vmatprep.subr.mxu0 0.0
    %498 = vmatpush1.msra.mxu0 %v70
    %499 = vmatprep.subr.mxu0 0.0
    %500 = vmatpush1.msra.mxu0 %v71
    %501 = vmatprep.subr.mxu0 0.0
    %502 = vmatpush1.msra.mxu0 %v72
    %503 = vmatprep.subr.mxu0 0.0
    %504 = vmatpush1.msra.mxu0 %v73
    %505 = vmatprep.subr.mxu0 0.0
    %506 = vmatpush1.msra.mxu0 %v74
    %507 = vmatprep.subr.mxu0 0.0
    %508 = vmatpush1.msra.mxu0 %v75
    %509 = vmatprep.subr.mxu0 0.0
    %510 = vmatpush1.msra.mxu0 %v76
    %511 = vmatprep.subr.mxu0 0.0
    %512 = vmatpush1.msra.mxu0 0.0
    %513 = vmatprep.subr.mxu0 0.0
    %514 = vmatpush1.msra.mxu0 0.0
    %515 = vmatprep.subr.mxu0 0.0
    %516 = vmatpush1.msra.mxu0 0.0
    %517 = vmatprep.subr.mxu0 0.0
    %518 = vmatpush1.msra.mxu0 0.0
    %519 = vmatprep.subr.mxu0 0.0
    %520 = vmatpush1.msra.mxu0 0.0
    %521 = vmatprep.subr.mxu0 0.0
    %522 = vmatpush1.msra.mxu0 0.0
    %523 = vmatprep.subr.mxu0 0.0
    %524 = vmatpush1.msra.mxu0 0.0
    %525 = vmatprep.subr.mxu0 0.0
    %526 = vmatpush1.msra.mxu0 0.0
    %527 = vmatprep.subr.mxu0 0.0
    %528 = vmatpush1.msra.mxu0 0.0
    %529 = vmatprep.subr.mxu0 0.0
    %530 = vmatpush1.msra.mxu0 0.0
    %531 = vmatprep.subr.mxu0 0.0
    %532 = vmatpush1.msra.mxu0 0.0
    %533 = vmatprep.subr.mxu0 0.0
    %534 = vmatpush1.msra.mxu0 0.0
    %535 = vmatprep.subr.mxu0 0.0
    %536 = vmatpush1.msra.mxu0 0.0
    %537 = vmatprep.subr.mxu0 0.0
    %538 = vmatpush1.msra.mxu0 0.0
    %539 = vmatprep.subr.mxu0 0.0
    %540 = vmatpush1.msra.mxu0 0.0
    %541 = vmatprep.subr.mxu0 0.0
    %542 = vmatpush1.msra.mxu0 0.0
    %543 = vmatprep.mubr.f32.mxu0 0.0
    %544 = vmatmul.mubr.f32.gmra.mrb[0].mxu0 %v465
    %v545 = vpop.f32.mrb[0].mxu0
    %v546 = vadd.f32 0.0, %v545
    %v547 = vpop.f32.mrb[0].mxu0
    %548 = vdwg.mxu0
    %v549 = vmul.f32 %v546, 0.001953125
    %550 = vmatprep.subr.mxu0 0.0
    %551 = vmatpush1.msra.mxu0 %v61
    %552 = vmatprep.subr.mxu0 0.0
    %553 = vmatpush1.msra.mxu0 %v62
    %554 = vmatprep.subr.mxu0 0.0
    %555 = vmatpush1.msra.mxu0 %v63
    %556 = vmatprep.subr.mxu0 0.0
    %557 = vmatpush1.msra.mxu0 %v64
    %558 = vmatprep.subr.mxu0 0.0
    %559 = vmatpush1.msra.mxu0 %v65
    %560 = vmatprep.subr.mxu0 0.0
    %561 = vmatpush1.msra.mxu0 %v66
    %562 = vmatprep.subr.mxu0 0.0
    %563 = vmatpush1.msra.mxu0 %v67
    %564 = vmatprep.subr.mxu0 0.0
    %565 = vmatpush1.msra.mxu0 %v68
    %566 = vmatprep.subr.mxu0 0.0
    %567 = vmatpush1.msra.mxu0 %v69
    %568 = vmatprep.subr.mxu0 0.0
    %569 = vmatpush1.msra.mxu0 %v70
    %570 = vmatprep.subr.mxu0 0.0
    %571 = vmatpush1.msra.mxu0 %v71
    %572 = vmatprep.subr.mxu0 0.0
    %573 = vmatpush1.msra.mxu0 %v72
    %574 = vmatprep.subr.mxu0 0.0
    %575 = vmatpush1.msra.mxu0 %v73
    %576 = vmatprep.subr.mxu0 0.0
    %577 = vmatpush1.msra.mxu0 %v74
    %578 = vmatprep.subr.mxu0 0.0
    %579 = vmatpush1.msra.mxu0 %v75
    %580 = vmatprep.subr.mxu0 0.0
    %581 = vmatpush1.msra.mxu0 %v76
    %582 = vmatprep.subr.mxu0 0.0
    %583 = vmatpush1.msra.mxu0 0.0
    %584 = vmatprep.subr.mxu0 0.0
    %585 = vmatpush1.msra.mxu0 0.0
    %586 = vmatprep.subr.mxu0 0.0
    %587 = vmatpush1.msra.mxu0 0.0
    %588 = vmatprep.subr.mxu0 0.0
    %589 = vmatpush1.msra.mxu0 0.0
    %590 = vmatprep.subr.mxu0 0.0
    %591 = vmatpush1.msra.mxu0 0.0
    %592 = vmatprep.subr.mxu0 0.0
    %593 = vmatpush1.msra.mxu0 0.0
    %594 = vmatprep.subr.mxu0 0.0
    %595 = vmatpush1.msra.mxu0 0.0
    %596 = vmatprep.subr.mxu0 0.0
    %597 = vmatpush1.msra.mxu0 0.0
    %598 = vmatprep.subr.mxu0 0.0
    %599 = vmatpush1.msra.mxu0 0.0
    %600 = vmatprep.subr.mxu0 0.0
    %601 = vmatpush1.msra.mxu0 0.0
    %602 = vmatprep.subr.mxu0 0.0
    %603 = vmatpush1.msra.mxu0 0.0
    %604 = vmatprep.subr.mxu0 0.0
    %605 = vmatpush1.msra.mxu0 0.0
    %606 = vmatprep.subr.mxu0 0.0
    %607 = vmatpush1.msra.mxu0 0.0
    %608 = vmatprep.subr.mxu0 0.0
    %609 = vmatpush1.msra.mxu0 0.0
    %610 = vmatprep.subr.mxu0 0.0
    %611 = vmatpush1.msra.mxu0 0.0
    %612 = vmatprep.subr.mxu0 0.0
    %613 = vmatpush1.msra.mxu0 0.0
    %614 = vmatprep.mubr.f32.mxu0 0.0
    %615 = vmatmul.mubr.f32.gmra.mrb[0].mxu0 %v478
    %v616 = vpop.f32.mrb[0].mxu0
    %v617 = vadd.f32 0.0, %v616
    %v618 = vpop.f32.mrb[0].mxu0
    %619 = vdwg.mxu0
    %v620 = vmul.f32 %v617, 0.001953125
    %v621 = vmul.f32 %v549, %v549
    %v622 = vsub.f32 %v620, %v621
    %v623 = vmax.f32 %v622, 0.0
    %v624 = vld [vmem:[%s4] sm:$0x1]
    %v625 = vadd.f32 %v623, 1e-05
    %v626 = vrsqrt.pop %v625
    %v627 = vmul.f32 %v624, %v626
    %v628 = vld [vmem:[%s5] sm:$0x1]
    %v629 = vmul.f32 %v549, %v627
    %v630 = vsub.f32 %v628, %v629
    %vm631 = vcmask 64512
    %v633 = vsel %vm631, %v627, 0
    %635 = vmatprep.subr.mxu0 0.0
    %636 = vmatpush1.msra.mxu0 %v77
    %637 = vmatprep.subr.mxu0 0.0
    %638 = vmatpush1.msra.mxu0 0.0
    %639 = vmatprep.subr.mxu0 0.0
    %640 = vmatpush1.msra.mxu0 0.0
    %641 = vmatprep.subr.mxu0 0.0
    %642 = vmatpush1.msra.mxu0 0.0
    %643 = vmatprep.subr.mxu0 0.0
    %644 = vmatpush1.msra.mxu0 0.0
    %645 = vmatprep.subr.mxu0 0.0
    %646 = vmatpush1.msra.mxu0 0.0
    %647 = vmatprep.subr.mxu0 0.0
    %648 = vmatpush1.msra.mxu0 0.0
    %649 = vmatprep.subr.mxu0 0.0
    %650 = vmatpush1.msra.mxu0 0.0
    %651 = vmatprep.subr.mxu0 0.0
    %652 = vmatpush1.msra.mxu0 0.0
    %653 = vmatprep.subr.mxu0 0.0
    %654 = vmatpush1.msra.mxu0 0.0
    %655 = vmatprep.subr.mxu0 0.0
    %656 = vmatpush1.msra.mxu0 0.0
    %657 = vmatprep.subr.mxu0 0.0
    %658 = vmatpush1.msra.mxu0 0.0
    %659 = vmatprep.subr.mxu0 0.0
    %660 = vmatpush1.msra.mxu0 0.0
    %661 = vmatprep.subr.mxu0 0.0
    %662 = vmatpush1.msra.mxu0 0.0
    %663 = vmatprep.subr.mxu0 0.0
    %664 = vmatpush1.msra.mxu0 0.0
    %665 = vmatprep.subr.mxu0 0.0
    %666 = vmatpush1.msra.mxu0 0.0
    %667 = vmatprep.subr.mxu0 0.0
    %668 = vmatpush1.msra.mxu0 0.0
    %669 = vmatprep.subr.mxu0 0.0
    %670 = vmatpush1.msra.mxu0 0.0
    %671 = vmatprep.subr.mxu0 0.0
    %672 = vmatpush1.msra.mxu0 0.0
    %673 = vmatprep.subr.mxu0 0.0
    %674 = vmatpush1.msra.mxu0 0.0
    %675 = vmatprep.subr.mxu0 0.0
    %676 = vmatpush1.msra.mxu0 0.0
    %677 = vmatprep.subr.mxu0 0.0
    %678 = vmatpush1.msra.mxu0 0.0
    %679 = vmatprep.subr.mxu0 0.0
    %680 = vmatpush1.msra.mxu0 0.0
    %681 = vmatprep.subr.mxu0 0.0
    %682 = vmatpush1.msra.mxu0 0.0
    %683 = vmatprep.subr.mxu0 0.0
    %684 = vmatpush1.msra.mxu0 0.0
    %685 = vmatprep.subr.mxu0 0.0
    %686 = vmatpush1.msra.mxu0 0.0
    %687 = vmatprep.subr.mxu0 0.0
    %688 = vmatpush1.msra.mxu0 0.0
    %689 = vmatprep.subr.mxu0 0.0
    %690 = vmatpush1.msra.mxu0 0.0
    %691 = vmatprep.subr.mxu0 0.0
    %692 = vmatpush1.msra.mxu0 0.0
    %693 = vmatprep.subr.mxu0 0.0
    %694 = vmatpush1.msra.mxu0 0.0
    %695 = vmatprep.subr.mxu0 0.0
    %696 = vmatpush1.msra.mxu0 0.0
    %697 = vmatprep.subr.mxu0 0.0
    %698 = vmatpush1.msra.mxu0 0.0
    %699 = vmatprep.mubr.f32.mxu0 0.0
    %700 = vmatmul.mubr.f32.gmra.mrb[0].mxu0 %v633
    %v701 = vpop.f32.mrb[0].mxu0
    %v702 = vadd.f32 0.0, %v701
    %v703 = vpop.f32.mrb[0].mxu0
    %704 = vdwg.mxu0
    %v706 = vsel %vm631, %v630, 0
    %708 = vmatprep.subr.mxu0 0.0
    %709 = vmatpush1.msra.mxu0 %v77
    %710 = vmatprep.subr.mxu0 0.0
    %711 = vmatpush1.msra.mxu0 0.0
    %712 = vmatprep.subr.mxu0 0.0
    %713 = vmatpush1.msra.mxu0 0.0
    %714 = vmatprep.subr.mxu0 0.0
    %715 = vmatpush1.msra.mxu0 0.0
    %716 = vmatprep.subr.mxu0 0.0
    %717 = vmatpush1.msra.mxu0 0.0
    %718 = vmatprep.subr.mxu0 0.0
    %719 = vmatpush1.msra.mxu0 0.0
    %720 = vmatprep.subr.mxu0 0.0
    %721 = vmatpush1.msra.mxu0 0.0
    %722 = vmatprep.subr.mxu0 0.0
    %723 = vmatpush1.msra.mxu0 0.0
    %724 = vmatprep.subr.mxu0 0.0
    %725 = vmatpush1.msra.mxu0 0.0
    %726 = vmatprep.subr.mxu0 0.0
    %727 = vmatpush1.msra.mxu0 0.0
    %728 = vmatprep.subr.mxu0 0.0
    %729 = vmatpush1.msra.mxu0 0.0
    %730 = vmatprep.subr.mxu0 0.0
    %731 = vmatpush1.msra.mxu0 0.0
    %732 = vmatprep.subr.mxu0 0.0
    %733 = vmatpush1.msra.mxu0 0.0
    %734 = vmatprep.subr.mxu0 0.0
    %735 = vmatpush1.msra.mxu0 0.0
    %736 = vmatprep.subr.mxu0 0.0
    %737 = vmatpush1.msra.mxu0 0.0
    %738 = vmatprep.subr.mxu0 0.0
    %739 = vmatpush1.msra.mxu0 0.0
    %740 = vmatprep.subr.mxu0 0.0
    %741 = vmatpush1.msra.mxu0 0.0
    %742 = vmatprep.subr.mxu0 0.0
    %743 = vmatpush1.msra.mxu0 0.0
    %744 = vmatprep.subr.mxu0 0.0
    %745 = vmatpush1.msra.mxu0 0.0
    %746 = vmatprep.subr.mxu0 0.0
    %747 = vmatpush1.msra.mxu0 0.0
    %748 = vmatprep.subr.mxu0 0.0
    %749 = vmatpush1.msra.mxu0 0.0
    %750 = vmatprep.subr.mxu0 0.0
    %751 = vmatpush1.msra.mxu0 0.0
    %752 = vmatprep.subr.mxu0 0.0
    %753 = vmatpush1.msra.mxu0 0.0
    %754 = vmatprep.subr.mxu0 0.0
    %755 = vmatpush1.msra.mxu0 0.0
    %756 = vmatprep.subr.mxu0 0.0
    %757 = vmatpush1.msra.mxu0 0.0
    %758 = vmatprep.subr.mxu0 0.0
    %759 = vmatpush1.msra.mxu0 0.0
    %760 = vmatprep.subr.mxu0 0.0
    %761 = vmatpush1.msra.mxu0 0.0
    %762 = vmatprep.subr.mxu0 0.0
    %763 = vmatpush1.msra.mxu0 0.0
    %764 = vmatprep.subr.mxu0 0.0
    %765 = vmatpush1.msra.mxu0 0.0
    %766 = vmatprep.subr.mxu0 0.0
    %767 = vmatpush1.msra.mxu0 0.0
    %768 = vmatprep.subr.mxu0 0.0
    %769 = vmatpush1.msra.mxu0 0.0
    %770 = vmatprep.subr.mxu0 0.0
    %771 = vmatpush1.msra.mxu0 0.0
    %772 = vmatprep.mubr.f32.mxu0 0.0
    %773 = vmatmul.mubr.f32.gmra.mrb[0].mxu0 %v706
    %v774 = vpop.f32.mrb[0].mxu0
    %v775 = vadd.f32 0.0, %v774
    %v776 = vpop.f32.mrb[0].mxu0
    %777 = vdwg.mxu0
    %v778 = vlaneseq
    %v779 = vshrl.u32 %v778, 7
    %v780 = vsub.s32 0, %v779
    %v781 = vrot.slane %v702, %v780
    %v782 = vmul.f32 %v453, %v781
    %v783 = vmul.f32 %v454, %v781
    %v784 = vmul.f32 %v455, %v781
    %v785 = vmul.f32 %v456, %v781
    %v786 = vlaneseq
    %v787 = vshrl.u32 %v786, 7
    %v788 = vsub.s32 0, %v787
    %v789 = vrot.slane %v775, %v788
    %v790 = vadd.f32 %v782, %v789
    %v791 = vadd.f32 %v783, %v789
    %v792 = vadd.f32 %v784, %v789
    %v793 = vadd.f32 %v785, %v789
    %v794 = vmax.f32 %v790, 0.0
    %v795 = vmax.f32 %v791, 0.0
    %v796 = vmax.f32 %v792, 0.0
    %v797 = vmax.f32 %v793, 0.0
    %798 = vst [vmem:[#allocation3] sm:$0xff] 0.0
    %vm799 = vcmask 130048
    %800 = vst.msk [vmem:[#allocation3 + $0x8] sm:$0xff] %vm799, 0.0
    %801 = vst [vmem:[#allocation3 + $0x10] sm:$0xff] 0.0
    %802 = vst.msk [vmem:[#allocation3 + $0x18] sm:$0xff] %vm799, 0.0
    %803 = vst [vmem:[#allocation3 + $0x20] sm:$0x3] 0.0
    %vm804 = vcmask 123904
    %805 = vst.msk [vmem:[#allocation3 + $0x28] sm:$0x3] %vm804, 0.0
    %806 = vst [vmem:[#allocation3 + $0x30] sm:$0xff] 0.0
    %807 = vst.msk [vmem:[#allocation3 + $0x38] sm:$0xff] %vm799, 0.0
    %808 = vst [vmem:[#allocation3 + $0x40] sm:$0xff] 0.0
    %809 = vst.msk [vmem:[#allocation3 + $0x48] sm:$0xff] %vm799, 0.0
    %810 = vst [vmem:[#allocation3 + $0x50] sm:$0x3] 0.0
    %811 = vst.msk [vmem:[#allocation3 + $0x58] sm:$0x3] %vm804, 0.0
    %vm816 = vcmask 1040384
    %v817 = vrot.slane %v794, 7
    %v818 = vrot.slane %v795, 7
    %v819 = vsel %vm816, %v817, %v818
    %v820 = vrot.slane %v796, 7
    %v821 = vrot.slane %v797, 7
    %v822 = vsel %vm816, %v820, %v821
    %823 = vrot.lane.b32.xlu0 %v817, 8
    %v824 = vpop.permute.xlu0 %823
    %825 = vrot.lane.b32.xlu0 %v819, 8
    %v826 = vpop.permute.xlu0 %825
    %827 = vrot.lane.b32.xlu0 %v818, 8
    %v828 = vpop.permute.xlu0 %827
    %829 = vrot.lane.b32.xlu0 %v820, 8
    %v830 = vpop.permute.xlu0 %829
    %831 = vrot.lane.b32.xlu0 %v822, 8
    %v832 = vpop.permute.xlu0 %831
    %833 = vrot.lane.b32.xlu0 %v821, 8
    %v834 = vpop.permute.xlu0 %833
    %vm841 = vcmask 1047617
    %842 = vst.msk [vmem:[#allocation3] sm:$0xfe] %vm841, %v824
    %vm843 = vcmask 64513
    %844 = vst.msk [vmem:[#allocation3 + $0x8] sm:$0xfe] %vm843, %v824
    %vm845 = vcmask 1047616
    %846 = vst.msk [vmem:[#allocation3 + $0x10] sm:$0xff] %vm845, %v826
    %847 = vst.msk [vmem:[#allocation3 + $0x18] sm:$0xff] %vm631, %v826
    %vm848 = vcmask 1040448
    %849 = vst.msk [vmem:[#allocation3 + $0x20] sm:$0x1] %vm848, %v828
    %vm850 = vcmask 57344
    %851 = vst.msk [vmem:[#allocation3 + $0x28] sm:$0x1] %vm850, %v828
    %852 = vst.msk [vmem:[#allocation3 + $0x30] sm:$0xfe] %vm841, %v830
    %853 = vst.msk [vmem:[#allocation3 + $0x38] sm:$0xfe] %vm843, %v830
    %854 = vst.msk [vmem:[#allocation3 + $0x40] sm:$0xff] %vm845, %v832
    %855 = vst.msk [vmem:[#allocation3 + $0x48] sm:$0xff] %vm631, %v832
    %856 = vst.msk [vmem:[#allocation3 + $0x50] sm:$0x1] %vm848, %v834
    %857 = vst.msk [vmem:[#allocation3 + $0x58] sm:$0x1] %vm850, %v834
    %v858 = vld [vmem:[#allocation3] sm:$0xff]
    %v859 = vld [vmem:[#allocation3 + $0x8] sm:$0xff]
    %v860 = vld [vmem:[#allocation3 + $0x10] sm:$0xff]
    %v861 = vld [vmem:[#allocation3 + $0x18] sm:$0xff]
    %v862 = vld [vmem:[#allocation3 + $0x20] sm:$0x3]
    %v863 = vld [vmem:[#allocation3 + $0x28] sm:$0x3]
    %v864 = vld [vmem:[#allocation3 + $0x30] sm:$0xff]
    %v865 = vld [vmem:[#allocation3 + $0x38] sm:$0xff]
    %v866 = vld [vmem:[#allocation3 + $0x40] sm:$0xff]
    %v867 = vld [vmem:[#allocation3 + $0x48] sm:$0xff]
    %v868 = vld [vmem:[#allocation3 + $0x50] sm:$0x3]
    %v869 = vld [vmem:[#allocation3 + $0x58] sm:$0x3]
    %v870 = vld [vmem:[#allocation7] sm:$0xff]
    %v871 = vld [vmem:[#allocation7 + $0x8] sm:$0xff]
    %v872 = vld [vmem:[#allocation7 + $0x10] sm:$0xff]
    %v873 = vld [vmem:[#allocation7 + $0x18] sm:$0xff]
    %v874 = vld [vmem:[#allocation7 + $0x20] sm:$0xff]
    %v875 = vld [vmem:[#allocation7 + $0x28] sm:$0xff]
    %v876 = vld [vmem:[#allocation7 + $0x30] sm:$0xff]
    %v877 = vld [vmem:[#allocation7 + $0x38] sm:$0xff]
    %v878 = vld [vmem:[#allocation7 + $0x40] sm:$0xff]
    %v879 = vld [vmem:[#allocation7 + $0x48] sm:$0xff]
    %v880 = vld [vmem:[#allocation7 + $0x50] sm:$0xff]
    %v881 = vld [vmem:[#allocation7 + $0x58] sm:$0xff]
    %v882 = vld [vmem:[#allocation7 + $0x60] sm:$0xff]
    %v883 = vld [vmem:[#allocation7 + $0x68] sm:$0xff]
    %v884 = vld [vmem:[#allocation7 + $0x70] sm:$0xff]
    %v885 = vld [vmem:[#allocation7 + $0x78] sm:$0xff]
    %v886 = vld [vmem:[#allocation7 + $0x80] sm:$0xff]
    %v887 = vld [vmem:[#allocation7 + $0x88] sm:$0xff]
    %v900 = vrot.slane %v858, 1
    %v901 = vrot.slane %v860, 1
    %v902 = vsel %vm132, %v900, %v901
    %v903 = vrot.slane %v859, 1
    %v904 = vrot.slane %v861, 1
    %v905 = vsel %vm132, %v903, %v904
    %v906 = vrot.slane %v862, 1
    %v907 = vsel %vm132, %v901, %v906
    %v908 = vrot.slane %v863, 1
    %v909 = vsel %vm132, %v904, %v908
    %v910 = vrot.slane %v864, 1
    %v911 = vrot.slane %v866, 1
    %v912 = vsel %vm132, %v910, %v911
    %v913 = vrot.slane %v865, 1
    %v914 = vrot.slane %v867, 1
    %v915 = vsel %vm132, %v913, %v914
    %v916 = vrot.slane %v868, 1
    %v917 = vsel %vm132, %v911, %v916
    %v918 = vrot.slane %v869, 1
    %v919 = vsel %vm132, %v914, %v918
    %s924 = scalar_lea.vmem [#allocation7], 144
    %v925 = vld [vmem:[%s924] sm:$0xff]
    %v926 = vld [vmem:[%s924 + $0x8] sm:$0xff]
    %v927 = vld [vmem:[%s924 + $0x10] sm:$0xff]
    %v928 = vld [vmem:[%s924 + $0x18] sm:$0xff]
    %v929 = vld [vmem:[%s924 + $0x20] sm:$0xff]
    %v930 = vld [vmem:[%s924 + $0x28] sm:$0xff]
    %v931 = vld [vmem:[%s924 + $0x30] sm:$0xff]
    %v932 = vld [vmem:[%s924 + $0x38] sm:$0xff]
    %v933 = vld [vmem:[%s924 + $0x40] sm:$0xff]
    %v934 = vld [vmem:[%s924 + $0x48] sm:$0xff]
    %v935 = vld [vmem:[%s924 + $0x50] sm:$0xff]
    %v936 = vld [vmem:[%s924 + $0x58] sm:$0xff]
    %v937 = vld [vmem:[%s924 + $0x60] sm:$0xff]
    %v938 = vld [vmem:[%s924 + $0x68] sm:$0xff]
    %v939 = vld [vmem:[%s924 + $0x70] sm:$0xff]
    %v940 = vld [vmem:[%s924 + $0x78] sm:$0xff]
    %v941 = vld [vmem:[%s924 + $0x80] sm:$0xff]
    %v942 = vld [vmem:[%s924 + $0x88] sm:$0xff]
    %v943 = vsel %vm799, %v905, 0
    %v945 = vsel %vm799, %v909, 0
    %v947 = vsel %vm799, %v915, 0
    %v949 = vsel %vm799, %v919, 0
    %951 = vmatprep.subr.mxu0 0.0
    %952 = vmatpush1.msra.mxu0 %v925
    %953 = vmatprep.subr.mxu0 0.0
    %954 = vmatpush1.msra.mxu0 %v926
    %955 = vmatprep.subr.mxu0 0.0
    %956 = vmatpush1.msra.mxu0 %v927
    %957 = vmatprep.subr.mxu0 0.0
    %958 = vmatpush1.msra.mxu0 %v928
    %959 = vmatprep.subr.mxu0 0.0
    %960 = vmatpush1.msra.mxu0 %v929
    %961 = vmatprep.subr.mxu0 0.0
    %962 = vmatpush1.msra.mxu0 %v930
    %963 = vmatprep.subr.mxu0 0.0
    %964 = vmatpush1.msra.mxu0 %v931
    %965 = vmatprep.subr.mxu0 0.0
    %966 = vmatpush1.msra.mxu0 %v932
    %967 = vmatprep.subr.mxu0 0.0
    %968 = vmatpush1.msra.mxu0 %v933
    %969 = vmatprep.subr.mxu0 0.0
    %970 = vmatpush1.msra.mxu0 %v934
    %971 = vmatprep.subr.mxu0 0.0
    %972 = vmatpush1.msra.mxu0 %v935
    %973 = vmatprep.subr.mxu0 0.0
    %974 = vmatpush1.msra.mxu0 %v936
    %975 = vmatprep.subr.mxu0 0.0
    %976 = vmatpush1.msra.mxu0 %v937
    %977 = vmatprep.subr.mxu0 0.0
    %978 = vmatpush1.msra.mxu0 %v938
    %979 = vmatprep.subr.mxu0 0.0
    %980 = vmatpush1.msra.mxu0 %v939
    %981 = vmatprep.subr.mxu0 0.0
    %982 = vmatpush1.msra.mxu0 %v940
    %983 = vmatprep.subr.mxu0 0.0
    %984 = vmatpush1.msra.mxu0 %v941
    %985 = vmatprep.subr.mxu0 0.0
    %986 = vmatpush1.msra.mxu0 %v942
    %987 = vmatprep.subr.mxu0 0.0
    %988 = vmatpush1.msra.mxu0 0.0
    %989 = vmatprep.subr.mxu0 0.0
    %990 = vmatpush1.msra.mxu0 0.0
    %991 = vmatprep.subr.mxu0 0.0
    %992 = vmatpush1.msra.mxu0 0.0
    %993 = vmatprep.subr.mxu0 0.0
    %994 = vmatpush1.msra.mxu0 0.0
    %995 = vmatprep.subr.mxu0 0.0
    %996 = vmatpush1.msra.mxu0 0.0
    %997 = vmatprep.subr.mxu0 0.0
    %998 = vmatpush1.msra.mxu0 0.0
    %999 = vmatprep.subr.mxu0 0.0
    %1000 = vmatpush1.msra.mxu0 0.0
    %1001 = vmatprep.subr.mxu0 0.0
    %1002 = vmatpush1.msra.mxu0 0.0
    %1003 = vmatprep.subr.mxu0 0.0
    %1004 = vmatpush1.msra.mxu0 0.0
    %1005 = vmatprep.subr.mxu0 0.0
    %1006 = vmatpush1.msra.mxu0 0.0
    %1007 = vmatprep.subr.mxu0 0.0
    %1008 = vmatpush1.msra.mxu0 0.0
    %1009 = vmatprep.subr.mxu0 0.0
    %1010 = vmatpush1.msra.mxu0 0.0
    %1011 = vmatprep.subr.mxu0 0.0
    %1012 = vmatpush1.msra.mxu0 0.0
    %1013 = vmatprep.subr.mxu0 0.0
    %1014 = vmatpush1.msra.mxu0 0.0
    %1015 = vmatprep.mubr.f32.mxu0 %v943
    %1016 = vmatmul.mubr.f32.gmra.mrb[0].mxu0 %v902
    %v1017 = vpop.f32.mrb[0].mxu0
    %v1018 = vadd.f32 0.0, %v1017
    %v1019 = vpop.f32.mrb[0].mxu0
    %1020 = vmatprep.mubr.f32.mxu0 %v945
    %1021 = vmatmul.mubr.f32.gmra.mrb[0].mxu0 %v907
    %v1022 = vpop.f32.mrb[0].mxu0
    %v1023 = vadd.f32 0.0, %v1022
    %v1024 = vpop.f32.mrb[0].mxu0
    %1025 = vmatprep.mubr.f32.mxu0 %v947
    %1026 = vmatmul.mubr.f32.gmra.mrb[0].mxu0 %v912
    %v1027 = vpop.f32.mrb[0].mxu0
    %v1028 = vadd.f32 0.0, %v1027
    %v1029 = vpop.f32.mrb[0].mxu0
    %1030 = vmatprep.mubr.f32.mxu0 %v949
    %1031 = vmatmul.mubr.f32.gmra.mrb[0].mxu0 %v917
    %v1032 = vpop.f32.mrb[0].mxu0
    %v1033 = vadd.f32 0.0, %v1032
    %v1034 = vpop.f32.mrb[0].mxu0
    %1035 = vdwg.mxu0
    %v1036 = vsel %vm799, %v859, 0
    %v1038 = vsel %vm799, %v861, 0
    %v1040 = vsel %vm799, %v865, 0
    %v1042 = vsel %vm799, %v867, 0
    %1044 = vmatprep.subr.mxu0 0.0
    %1045 = vmatpush1.msra.mxu0 %v870
    %1046 = vmatprep.subr.mxu0 0.0
    %1047 = vmatpush1.msra.mxu0 %v871
    %1048 = vmatprep.subr.mxu0 0.0
    %1049 = vmatpush1.msra.mxu0 %v872
    %1050 = vmatprep.subr.mxu0 0.0
    %1051 = vmatpush1.msra.mxu0 %v873
    %1052 = vmatprep.subr.mxu0 0.0
    %1053 = vmatpush1.msra.mxu0 %v874
    %1054 = vmatprep.subr.mxu0 0.0
    %1055 = vmatpush1.msra.mxu0 %v875
    %1056 = vmatprep.subr.mxu0 0.0
    %1057 = vmatpush1.msra.mxu0 %v876
    %1058 = vmatprep.subr.mxu0 0.0
    %1059 = vmatpush1.msra.mxu0 %v877
    %1060 = vmatprep.subr.mxu0 0.0
    %1061 = vmatpush1.msra.mxu0 %v878
    %1062 = vmatprep.subr.mxu0 0.0
    %1063 = vmatpush1.msra.mxu0 %v879
    %1064 = vmatprep.subr.mxu0 0.0
    %1065 = vmatpush1.msra.mxu0 %v880
    %1066 = vmatprep.subr.mxu0 0.0
    %1067 = vmatpush1.msra.mxu0 %v881
    %1068 = vmatprep.subr.mxu0 0.0
    %1069 = vmatpush1.msra.mxu0 %v882
    %1070 = vmatprep.subr.mxu0 0.0
    %1071 = vmatpush1.msra.mxu0 %v883
    %1072 = vmatprep.subr.mxu0 0.0
    %1073 = vmatpush1.msra.mxu0 %v884
    %1074 = vmatprep.subr.mxu0 0.0
    %1075 = vmatpush1.msra.mxu0 %v885
    %1076 = vmatprep.subr.mxu0 0.0
    %1077 = vmatpush1.msra.mxu0 %v886
    %1078 = vmatprep.subr.mxu0 0.0
    %1079 = vmatpush1.msra.mxu0 %v887
    %1080 = vmatprep.subr.mxu0 0.0
    %1081 = vmatpush1.msra.mxu0 0.0
    %1082 = vmatprep.subr.mxu0 0.0
    %1083 = vmatpush1.msra.mxu0 0.0
    %1084 = vmatprep.subr.mxu0 0.0
    %1085 = vmatpush1.msra.mxu0 0.0
    %1086 = vmatprep.subr.mxu0 0.0
    %1087 = vmatpush1.msra.mxu0 0.0
    %1088 = vmatprep.subr.mxu0 0.0
    %1089 = vmatpush1.msra.mxu0 0.0
    %1090 = vmatprep.subr.mxu0 0.0
    %1091 = vmatpush1.msra.mxu0 0.0
    %1092 = vmatprep.subr.mxu0 0.0
    %1093 = vmatpush1.msra.mxu0 0.0
    %1094 = vmatprep.subr.mxu0 0.0
    %1095 = vmatpush1.msra.mxu0 0.0
    %1096 = vmatprep.subr.mxu0 0.0
    %1097 = vmatpush1.msra.mxu0 0.0
    %1098 = vmatprep.subr.mxu0 0.0
    %1099 = vmatpush1.msra.mxu0 0.0
    %1100 = vmatprep.subr.mxu0 0.0
    %1101 = vmatpush1.msra.mxu0 0.0
    %1102 = vmatprep.subr.mxu0 0.0
    %1103 = vmatpush1.msra.mxu0 0.0
    %1104 = vmatprep.subr.mxu0 0.0
    %1105 = vmatpush1.msra.mxu0 0.0
    %1106 = vmatprep.subr.mxu0 0.0
    %1107 = vmatpush1.msra.mxu0 0.0
    %1108 = vmatprep.mubr.f32.mxu0 %v1036
    %1109 = vmatmul.mubr.f32.gmra.mrb[0].mxu0 %v858
    %v1110 = vpop.f32.mrb[0].mxu0
    %v1111 = vadd.f32 %v1018, %v1110
    %v1112 = vpop.f32.mrb[0].mxu0
    %1113 = vmatprep.mubr.f32.mxu0 %v1038
    %1114 = vmatmul.mubr.f32.gmra.mrb[0].mxu0 %v860
    %v1115 = vpop.f32.mrb[0].mxu0
    %v1116 = vadd.f32 %v1023, %v1115
    %v1117 = vpop.f32.mrb[0].mxu0
    %1118 = vmatprep.mubr.f32.mxu0 %v1040
    %1119 = vmatmul.mubr.f32.gmra.mrb[0].mxu0 %v864
    %v1120 = vpop.f32.mrb[0].mxu0
    %v1121 = vadd.f32 %v1028, %v1120
    %v1122 = vpop.f32.mrb[0].mxu0
    %1123 = vmatprep.mubr.f32.mxu0 %v1042
    %1124 = vmatmul.mubr.f32.gmra.mrb[0].mxu0 %v866
    %v1125 = vpop.f32.mrb[0].mxu0
    %v1126 = vadd.f32 %v1033, %v1125
    %v1127 = vpop.f32.mrb[0].mxu0
    %1128 = vdwg.mxu0
    %v1129 = vrot.slane %v858, 2
    %v1130 = vrot.slane %v860, 2
    %v1131 = vsel %vm339, %v1129, %v1130
    %v1132 = vrot.slane %v859, 2
    %v1133 = vrot.slane %v861, 2
    %v1134 = vsel %vm339, %v1132, %v1133
    %v1135 = vrot.slane %v862, 2
    %v1136 = vsel %vm339, %v1130, %v1135
    %v1137 = vrot.slane %v863, 2
    %v1138 = vsel %vm339, %v1133, %v1137
    %v1139 = vrot.slane %v864, 2
    %v1140 = vrot.slane %v866, 2
    %v1141 = vsel %vm339, %v1139, %v1140
    %v1142 = vrot.slane %v865, 2
    %v1143 = vrot.slane %v867, 2
    %v1144 = vsel %vm339, %v1142, %v1143
    %v1145 = vrot.slane %v868, 2
    %v1146 = vsel %vm339, %v1140, %v1145
    %v1147 = vrot.slane %v869, 2
    %v1148 = vsel %vm339, %v1143, %v1147
    %s1153 = scalar_lea.vmem [#allocation7], 288
    %v1154 = vld [vmem:[%s1153] sm:$0xff]
    %v1155 = vld [vmem:[%s1153 + $0x8] sm:$0xff]
    %v1156 = vld [vmem:[%s1153 + $0x10] sm:$0xff]
    %v1157 = vld [vmem:[%s1153 + $0x18] sm:$0xff]
    %v1158 = vld [vmem:[%s1153 + $0x20] sm:$0xff]
    %v1159 = vld [vmem:[%s1153 + $0x28] sm:$0xff]
    %v1160 = vld [vmem:[%s1153 + $0x30] sm:$0xff]
    %v1161 = vld [vmem:[%s1153 + $0x38] sm:$0xff]
    %v1162 = vld [vmem:[%s1153 + $0x40] sm:$0xff]
    %v1163 = vld [vmem:[%s1153 + $0x48] sm:$0xff]
    %v1164 = vld [vmem:[%s1153 + $0x50] sm:$0xff]
    %v1165 = vld [vmem:[%s1153 + $0x58] sm:$0xff]
    %v1166 = vld [vmem:[%s1153 + $0x60] sm:$0xff]
    %v1167 = vld [vmem:[%s1153 + $0x68] sm:$0xff]
    %v1168 = vld [vmem:[%s1153 + $0x70] sm:$0xff]
    %v1169 = vld [vmem:[%s1153 + $0x78] sm:$0xff]
    %v1170 = vld [vmem:[%s1153 + $0x80] sm:$0xff]
    %v1171 = vld [vmem:[%s1153 + $0x88] sm:$0xff]
    %v1172 = vsel %vm799, %v1134, 0
    %v1174 = vsel %vm799, %v1138, 0
    %v1176 = vsel %vm799, %v1144, 0
    %v1178 = vsel %vm799, %v1148, 0
    %1180 = vmatprep.subr.mxu0 0.0
    %1181 = vmatpush1.msra.mxu0 %v1154
    %1182 = vmatprep.subr.mxu0 0.0
    %1183 = vmatpush1.msra.mxu0 %v1155
    %1184 = vmatprep.subr.mxu0 0.0
    %1185 = vmatpush1.msra.mxu0 %v1156
    %1186 = vmatprep.subr.mxu0 0.0
    %1187 = vmatpush1.msra.mxu0 %v1157
    %1188 = vmatprep.subr.mxu0 0.0
    %1189 = vmatpush1.msra.mxu0 %v1158
    %1190 = vmatprep.subr.mxu0 0.0
    %1191 = vmatpush1.msra.mxu0 %v1159
    %1192 = vmatprep.subr.mxu0 0.0
    %1193 = vmatpush1.msra.mxu0 %v1160
    %1194 = vmatprep.subr.mxu0 0.0
    %1195 = vmatpush1.msra.mxu0 %v1161
    %1196 = vmatprep.subr.mxu0 0.0
    %1197 = vmatpush1.msra.mxu0 %v1162
    %1198 = vmatprep.subr.mxu0 0.0
    %1199 = vmatpush1.msra.mxu0 %v1163
    %1200 = vmatprep.subr.mxu0 0.0
    %1201 = vmatpush1.msra.mxu0 %v1164
    %1202 = vmatprep.subr.mxu0 0.0
    %1203 = vmatpush1.msra.mxu0 %v1165
    %1204 = vmatprep.subr.mxu0 0.0
    %1205 = vmatpush1.msra.mxu0 %v1166
    %1206 = vmatprep.subr.mxu0 0.0
    %1207 = vmatpush1.msra.mxu0 %v1167
    %1208 = vmatprep.subr.mxu0 0.0
    %1209 = vmatpush1.msra.mxu0 %v1168
    %1210 = vmatprep.subr.mxu0 0.0
    %1211 = vmatpush1.msra.mxu0 %v1169
    %1212 = vmatprep.subr.mxu0 0.0
    %1213 = vmatpush1.msra.mxu0 %v1170
    %1214 = vmatprep.subr.mxu0 0.0
    %1215 = vmatpush1.msra.mxu0 %v1171
    %1216 = vmatprep.subr.mxu0 0.0
    %1217 = vmatpush1.msra.mxu0 0.0
    %1218 = vmatprep.subr.mxu0 0.0
    %1219 = vmatpush1.msra.mxu0 0.0
    %1220 = vmatprep.subr.mxu0 0.0
    %1221 = vmatpush1.msra.mxu0 0.0
    %1222 = vmatprep.subr.mxu0 0.0
    %1223 = vmatpush1.msra.mxu0 0.0
    %1224 = vmatprep.subr.mxu0 0.0
    %1225 = vmatpush1.msra.mxu0 0.0
    %1226 = vmatprep.subr.mxu0 0.0
    %1227 = vmatpush1.msra.mxu0 0.0
    %1228 = vmatprep.subr.mxu0 0.0
    %1229 = vmatpush1.msra.mxu0 0.0
    %1230 = vmatprep.subr.mxu0 0.0
    %1231 = vmatpush1.msra.mxu0 0.0
    %1232 = vmatprep.subr.mxu0 0.0
    %1233 = vmatpush1.msra.mxu0 0.0
    %1234 = vmatprep.subr.mxu0 0.0
    %1235 = vmatpush1.msra.mxu0 0.0
    %1236 = vmatprep.subr.mxu0 0.0
    %1237 = vmatpush1.msra.mxu0 0.0
    %1238 = vmatprep.subr.mxu0 0.0
    %1239 = vmatpush1.msra.mxu0 0.0
    %1240 = vmatprep.subr.mxu0 0.0
    %1241 = vmatpush1.msra.mxu0 0.0
    %1242 = vmatprep.subr.mxu0 0.0
    %1243 = vmatpush1.msra.mxu0 0.0
    %1244 = vmatprep.mubr.f32.mxu0 %v1172
    %1245 = vmatmul.mubr.f32.gmra.mrb[0].mxu0 %v1131
    %v1246 = vpop.f32.mrb[0].mxu0
    %v1247 = vadd.f32 0.0, %v1246
    %v1248 = vpop.f32.mrb[0].mxu0
    %1249 = vmatprep.mubr.f32.mxu0 %v1174
    %1250 = vmatmul.mubr.f32.gmra.mrb[0].mxu0 %v1136
    %v1251 = vpop.f32.mrb[0].mxu0
    %v1252 = vadd.f32 0.0, %v1251
    %v1253 = vpop.f32.mrb[0].mxu0
    %1254 = vmatprep.mubr.f32.mxu0 %v1176
    %1255 = vmatmul.mubr.f32.gmra.mrb[0].mxu0 %v1141
    %v1256 = vpop.f32.mrb[0].mxu0
    %v1257 = vadd.f32 0.0, %v1256
    %v1258 = vpop.f32.mrb[0].mxu0
    %1259 = vmatprep.mubr.f32.mxu0 %v1178
    %1260 = vmatmul.mubr.f32.gmra.mrb[0].mxu0 %v1146
    %v1261 = vpop.f32.mrb[0].mxu0
    %v1262 = vadd.f32 0.0, %v1261
    %v1263 = vpop.f32.mrb[0].mxu0
    %1264 = vdwg.mxu0
    %v1265 = vadd.f32 %v1111, %v1247
    %v1266 = vadd.f32 %v1116, %v1252
    %v1267 = vadd.f32 %v1121, %v1257
    %v1268 = vadd.f32 %v1126, %v1262
    %v1269 = vadd.f32 %v1265, %v1266
    %v1270 = vadd.f32 %v1269, %v1267
    %v1271 = vadd.f32 %v1270, %v1268
    %v1272 = vrot.slane %v1271, 4
    %v1273 = vadd.f32 %v1271, %v1272
    %v1274 = vrot.slane %v1273, 2
    %v1275 = vadd.f32 %v1273, %v1274
    %v1276 = vrot.slane %v1275, 1
    %v1277 = vadd.f32 %v1275, %v1276
    %v1278 = vmul.f32 %v1265, %v1265
    %v1279 = vmul.f32 %v1266, %v1266
    %v1280 = vmul.f32 %v1267, %v1267
    %v1281 = vmul.f32 %v1268, %v1268
    %v1282 = vadd.f32 %v1278, %v1279
    %v1283 = vadd.f32 %v1282, %v1280
    %v1284 = vadd.f32 %v1283, %v1281
    %v1285 = vrot.slane %v1284, 4
    %v1286 = vadd.f32 %v1284, %v1285
    %v1287 = vrot.slane %v1286, 2
    %v1288 = vadd.f32 %v1286, %v1287
    %v1289 = vrot.slane %v1288, 1
    %v1290 = vadd.f32 %v1288, %v1289
    %1291 = vmatprep.subr.mxu0 0.0
    %1292 = vmatpush1.msra.mxu0 %v61
    %1293 = vmatprep.subr.mxu0 0.0
    %1294 = vmatpush1.msra.mxu0 %v62
    %1295 = vmatprep.subr.mxu0 0.0
    %1296 = vmatpush1.msra.mxu0 %v63
    %1297 = vmatprep.subr.mxu0 0.0
    %1298 = vmatpush1.msra.mxu0 %v64
    %1299 = vmatprep.subr.mxu0 0.0
    %1300 = vmatpush1.msra.mxu0 %v65
    %1301 = vmatprep.subr.mxu0 0.0
    %1302 = vmatpush1.msra.mxu0 %v66
    %1303 = vmatprep.subr.mxu0 0.0
    %1304 = vmatpush1.msra.mxu0 %v67
    %1305 = vmatprep.subr.mxu0 0.0
    %1306 = vmatpush1.msra.mxu0 %v68
    %1307 = vmatprep.subr.mxu0 0.0
    %1308 = vmatpush1.msra.mxu0 %v69
    %1309 = vmatprep.subr.mxu0 0.0
    %1310 = vmatpush1.msra.mxu0 %v70
    %1311 = vmatprep.subr.mxu0 0.0
    %1312 = vmatpush1.msra.mxu0 %v71
    %1313 = vmatprep.subr.mxu0 0.0
    %1314 = vmatpush1.msra.mxu0 %v72
    %1315 = vmatprep.subr.mxu0 0.0
    %1316 = vmatpush1.msra.mxu0 %v73
    %1317 = vmatprep.subr.mxu0 0.0
    %1318 = vmatpush1.msra.mxu0 %v74
    %1319 = vmatprep.subr.mxu0 0.0
    %1320 = vmatpush1.msra.mxu0 %v75
    %1321 = vmatprep.subr.mxu0 0.0
    %1322 = vmatpush1.msra.mxu0 %v76
    %1323 = vmatprep.subr.mxu0 0.0
    %1324 = vmatpush1.msra.mxu0 0.0
    %1325 = vmatprep.subr.mxu0 0.0
    %1326 = vmatpush1.msra.mxu0 0.0
    %1327 = vmatprep.subr.mxu0 0.0
    %1328 = vmatpush1.msra.mxu0 0.0
    %1329 = vmatprep.subr.mxu0 0.0
    %1330 = vmatpush1.msra.mxu0 0.0
    %1331 = vmatprep.subr.mxu0 0.0
    %1332 = vmatpush1.msra.mxu0 0.0
    %1333 = vmatprep.subr.mxu0 0.0
    %1334 = vmatpush1.msra.mxu0 0.0
    %1335 = vmatprep.subr.mxu0 0.0
    %1336 = vmatpush1.msra.mxu0 0.0
    %1337 = vmatprep.subr.mxu0 0.0
    %1338 = vmatpush1.msra.mxu0 0.0
    %1339 = vmatprep.subr.mxu0 0.0
    %1340 = vmatpush1.msra.mxu0 0.0
    %1341 = vmatprep.subr.mxu0 0.0
    %1342 = vmatpush1.msra.mxu0 0.0
    %1343 = vmatprep.subr.mxu0 0.0
    %1344 = vmatpush1.msra.mxu0 0.0
    %1345 = vmatprep.subr.mxu0 0.0
    %1346 = vmatpush1.msra.mxu0 0.0
    %1347 = vmatprep.subr.mxu0 0.0
    %1348 = vmatpush1.msra.mxu0 0.0
    %1349 = vmatprep.subr.mxu0 0.0
    %1350 = vmatpush1.msra.mxu0 0.0
    %1351 = vmatprep.subr.mxu0 0.0
    %1352 = vmatpush1.msra.mxu0 0.0
    %1353 = vmatprep.subr.mxu0 0.0
    %1354 = vmatpush1.msra.mxu0 0.0
    %1355 = vmatprep.mubr.f32.mxu0 0.0
    %1356 = vmatmul.mubr.f32.gmra.mrb[0].mxu0 %v1277
    %v1357 = vpop.f32.mrb[0].mxu0
    %v1358 = vadd.f32 0.0, %v1357
    %v1359 = vpop.f32.mrb[0].mxu0
    %1360 = vdwg.mxu0
    %v1361 = vmul.f32 %v1358, 0.001953125
    %1362 = vmatprep.subr.mxu0 0.0
    %1363 = vmatpush1.msra.mxu0 %v61
    %1364 = vmatprep.subr.mxu0 0.0
    %1365 = vmatpush1.msra.mxu0 %v62
    %1366 = vmatprep.subr.mxu0 0.0
    %1367 = vmatpush1.msra.mxu0 %v63
    %1368 = vmatprep.subr.mxu0 0.0
    %1369 = vmatpush1.msra.mxu0 %v64
    %1370 = vmatprep.subr.mxu0 0.0
    %1371 = vmatpush1.msra.mxu0 %v65
    %1372 = vmatprep.subr.mxu0 0.0
    %1373 = vmatpush1.msra.mxu0 %v66
    %1374 = vmatprep.subr.mxu0 0.0
    %1375 = vmatpush1.msra.mxu0 %v67
    %1376 = vmatprep.subr.mxu0 0.0
    %1377 = vmatpush1.msra.mxu0 %v68
    %1378 = vmatprep.subr.mxu0 0.0
    %1379 = vmatpush1.msra.mxu0 %v69
    %1380 = vmatprep.subr.mxu0 0.0
    %1381 = vmatpush1.msra.mxu0 %v70
    %1382 = vmatprep.subr.mxu0 0.0
    %1383 = vmatpush1.msra.mxu0 %v71
    %1384 = vmatprep.subr.mxu0 0.0
    %1385 = vmatpush1.msra.mxu0 %v72
    %1386 = vmatprep.subr.mxu0 0.0
    %1387 = vmatpush1.msra.mxu0 %v73
    %1388 = vmatprep.subr.mxu0 0.0
    %1389 = vmatpush1.msra.mxu0 %v74
    %1390 = vmatprep.subr.mxu0 0.0
    %1391 = vmatpush1.msra.mxu0 %v75
    %1392 = vmatprep.subr.mxu0 0.0
    %1393 = vmatpush1.msra.mxu0 %v76
    %1394 = vmatprep.subr.mxu0 0.0
    %1395 = vmatpush1.msra.mxu0 0.0
    %1396 = vmatprep.subr.mxu0 0.0
    %1397 = vmatpush1.msra.mxu0 0.0
    %1398 = vmatprep.subr.mxu0 0.0
    %1399 = vmatpush1.msra.mxu0 0.0
    %1400 = vmatprep.subr.mxu0 0.0
    %1401 = vmatpush1.msra.mxu0 0.0
    %1402 = vmatprep.subr.mxu0 0.0
    %1403 = vmatpush1.msra.mxu0 0.0
    %1404 = vmatprep.subr.mxu0 0.0
    %1405 = vmatpush1.msra.mxu0 0.0
    %1406 = vmatprep.subr.mxu0 0.0
    %1407 = vmatpush1.msra.mxu0 0.0
    %1408 = vmatprep.subr.mxu0 0.0
    %1409 = vmatpush1.msra.mxu0 0.0
    %1410 = vmatprep.subr.mxu0 0.0
    %1411 = vmatpush1.msra.mxu0 0.0
    %1412 = vmatprep.subr.mxu0 0.0
    %1413 = vmatpush1.msra.mxu0 0.0
    %1414 = vmatprep.subr.mxu0 0.0
    %1415 = vmatpush1.msra.mxu0 0.0
    %1416 = vmatprep.subr.mxu0 0.0
    %1417 = vmatpush1.msra.mxu0 0.0
    %1418 = vmatprep.subr.mxu0 0.0
    %1419 = vmatpush1.msra.mxu0 0.0
    %1420 = vmatprep.subr.mxu0 0.0
    %1421 = vmatpush1.msra.mxu0 0.0
    %1422 = vmatprep.subr.mxu0 0.0
    %1423 = vmatpush1.msra.mxu0 0.0
    %1424 = vmatprep.subr.mxu0 0.0
    %1425 = vmatpush1.msra.mxu0 0.0
    %1426 = vmatprep.mubr.f32.mxu0 0.0
    %1427 = vmatmul.mubr.f32.gmra.mrb[0].mxu0 %v1290
    %v1428 = vpop.f32.mrb[0].mxu0
    %v1429 = vadd.f32 0.0, %v1428
    %v1430 = vpop.f32.mrb[0].mxu0
    %1431 = vdwg.mxu0
    %v1432 = vmul.f32 %v1429, 0.001953125
    %v1433 = vmul.f32 %v1361, %v1361
    %v1434 = vsub.f32 %v1432, %v1433
    %v1435 = vmax.f32 %v1434, 0.0
    %v1436 = vld [vmem:[%s7] sm:$0x1]
    %v1437 = vadd.f32 %v1435, 1e-05
    %v1438 = vrsqrt.pop %v1437
    %v1439 = vmul.f32 %v1436, %v1438
    %v1440 = vld [vmem:[%s8] sm:$0x1]
    %v1441 = vmul.f32 %v1361, %v1439
    %v1442 = vsub.f32 %v1440, %v1441
    %v1444 = vsel %vm631, %v1439, 0
    %1446 = vmatprep.subr.mxu0 0.0
    %1447 = vmatpush1.msra.mxu0 %v77
    %1448 = vmatprep.subr.mxu0 0.0
    %1449 = vmatpush1.msra.mxu0 0.0
    %1450 = vmatprep.subr.mxu0 0.0
    %1451 = vmatpush1.msra.mxu0 0.0
    %1452 = vmatprep.subr.mxu0 0.0
    %1453 = vmatpush1.msra.mxu0 0.0
    %1454 = vmatprep.subr.mxu0 0.0
    %1455 = vmatpush1.msra.mxu0 0.0
    %1456 = vmatprep.subr.mxu0 0.0
    %1457 = vmatpush1.msra.mxu0 0.0
    %1458 = vmatprep.subr.mxu0 0.0
    %1459 = vmatpush1.msra.mxu0 0.0
    %1460 = vmatprep.subr.mxu0 0.0
    %1461 = vmatpush1.msra.mxu0 0.0
    %1462 = vmatprep.subr.mxu0 0.0
    %1463 = vmatpush1.msra.mxu0 0.0
    %1464 = vmatprep.subr.mxu0 0.0
    %1465 = vmatpush1.msra.mxu0 0.0
    %1466 = vmatprep.subr.mxu0 0.0
    %1467 = vmatpush1.msra.mxu0 0.0
    %1468 = vmatprep.subr.mxu0 0.0
    %1469 = vmatpush1.msra.mxu0 0.0
    %1470 = vmatprep.subr.mxu0 0.0
    %1471 = vmatpush1.msra.mxu0 0.0
    %1472 = vmatprep.subr.mxu0 0.0
    %1473 = vmatpush1.msra.mxu0 0.0
    %1474 = vmatprep.subr.mxu0 0.0
    %1475 = vmatpush1.msra.mxu0 0.0
    %1476 = vmatprep.subr.mxu0 0.0
    %1477 = vmatpush1.msra.mxu0 0.0
    %1478 = vmatprep.subr.mxu0 0.0
    %1479 = vmatpush1.msra.mxu0 0.0
    %1480 = vmatprep.subr.mxu0 0.0
    %1481 = vmatpush1.msra.mxu0 0.0
    %1482 = vmatprep.subr.mxu0 0.0
    %1483 = vmatpush1.msra.mxu0 0.0
    %1484 = vmatprep.subr.mxu0 0.0
    %1485 = vmatpush1.msra.mxu0 0.0
    %1486 = vmatprep.subr.mxu0 0.0
    %1487 = vmatpush1.msra.mxu0 0.0
    %1488 = vmatprep.subr.mxu0 0.0
    %1489 = vmatpush1.msra.mxu0 0.0
    %1490 = vmatprep.subr.mxu0 0.0
    %1491 = vmatpush1.msra.mxu0 0.0
    %1492 = vmatprep.subr.mxu0 0.0
    %1493 = vmatpush1.msra.mxu0 0.0
    %1494 = vmatprep.subr.mxu0 0.0
    %1495 = vmatpush1.msra.mxu0 0.0
    %1496 = vmatprep.subr.mxu0 0.0
    %1497 = vmatpush1.msra.mxu0 0.0
    %1498 = vmatprep.subr.mxu0 0.0
    %1499 = vmatpush1.msra.mxu0 0.0
    %1500 = vmatprep.subr.mxu0 0.0
    %1501 = vmatpush1.msra.mxu0 0.0
    %1502 = vmatprep.subr.mxu0 0.0
    %1503 = vmatpush1.msra.mxu0 0.0
    %1504 = vmatprep.subr.mxu0 0.0
    %1505 = vmatpush1.msra.mxu0 0.0
    %1506 = vmatprep.subr.mxu0 0.0
    %1507 = vmatpush1.msra.mxu0 0.0
    %1508 = vmatprep.subr.mxu0 0.0
    %1509 = vmatpush1.msra.mxu0 0.0
    %1510 = vmatprep.mubr.f32.mxu0 0.0
    %1511 = vmatmul.mubr.f32.gmra.mrb[0].mxu0 %v1444
    %v1512 = vpop.f32.mrb[0].mxu0
    %v1513 = vadd.f32 0.0, %v1512
    %v1514 = vpop.f32.mrb[0].mxu0
    %1515 = vdwg.mxu0
    %v1517 = vsel %vm631, %v1442, 0
    %1519 = vmatprep.subr.mxu0 0.0
    %1520 = vmatpush1.msra.mxu0 %v77
    %1521 = vmatprep.subr.mxu0 0.0
    %1522 = vmatpush1.msra.mxu0 0.0
    %1523 = vmatprep.subr.mxu0 0.0
    %1524 = vmatpush1.msra.mxu0 0.0
    %1525 = vmatprep.subr.mxu0 0.0
    %1526 = vmatpush1.msra.mxu0 0.0
    %1527 = vmatprep.subr.mxu0 0.0
    %1528 = vmatpush1.msra.mxu0 0.0
    %1529 = vmatprep.subr.mxu0 0.0
    %1530 = vmatpush1.msra.mxu0 0.0
    %1531 = vmatprep.subr.mxu0 0.0
    %1532 = vmatpush1.msra.mxu0 0.0
    %1533 = vmatprep.subr.mxu0 0.0
    %1534 = vmatpush1.msra.mxu0 0.0
    %1535 = vmatprep.subr.mxu0 0.0
    %1536 = vmatpush1.msra.mxu0 0.0
    %1537 = vmatprep.subr.mxu0 0.0
    %1538 = vmatpush1.msra.mxu0 0.0
    %1539 = vmatprep.subr.mxu0 0.0
    %1540 = vmatpush1.msra.mxu0 0.0
    %1541 = vmatprep.subr.mxu0 0.0
    %1542 = vmatpush1.msra.mxu0 0.0
    %1543 = vmatprep.subr.mxu0 0.0
    %1544 = vmatpush1.msra.mxu0 0.0
    %1545 = vmatprep.subr.mxu0 0.0
    %1546 = vmatpush1.msra.mxu0 0.0
    %1547 = vmatprep.subr.mxu0 0.0
    %1548 = vmatpush1.msra.mxu0 0.0
    %1549 = vmatprep.subr.mxu0 0.0
    %1550 = vmatpush1.msra.mxu0 0.0
    %1551 = vmatprep.subr.mxu0 0.0
    %1552 = vmatpush1.msra.mxu0 0.0
    %1553 = vmatprep.subr.mxu0 0.0
    %1554 = vmatpush1.msra.mxu0 0.0
    %1555 = vmatprep.subr.mxu0 0.0
    %1556 = vmatpush1.msra.mxu0 0.0
    %1557 = vmatprep.subr.mxu0 0.0
    %1558 = vmatpush1.msra.mxu0 0.0
    %1559 = vmatprep.subr.mxu0 0.0
    %1560 = vmatpush1.msra.mxu0 0.0
    %1561 = vmatprep.subr.mxu0 0.0
    %1562 = vmatpush1.msra.mxu0 0.0
    %1563 = vmatprep.subr.mxu0 0.0
    %1564 = vmatpush1.msra.mxu0 0.0
    %1565 = vmatprep.subr.mxu0 0.0
    %1566 = vmatpush1.msra.mxu0 0.0
    %1567 = vmatprep.subr.mxu0 0.0
    %1568 = vmatpush1.msra.mxu0 0.0
    %1569 = vmatprep.subr.mxu0 0.0
    %1570 = vmatpush1.msra.mxu0 0.0
    %1571 = vmatprep.subr.mxu0 0.0
    %1572 = vmatpush1.msra.mxu0 0.0
    %1573 = vmatprep.subr.mxu0 0.0
    %1574 = vmatpush1.msra.mxu0 0.0
    %1575 = vmatprep.subr.mxu0 0.0
    %1576 = vmatpush1.msra.mxu0 0.0
    %1577 = vmatprep.subr.mxu0 0.0
    %1578 = vmatpush1.msra.mxu0 0.0
    %1579 = vmatprep.subr.mxu0 0.0
    %1580 = vmatpush1.msra.mxu0 0.0
    %1581 = vmatprep.subr.mxu0 0.0
    %1582 = vmatpush1.msra.mxu0 0.0
    %1583 = vmatprep.mubr.f32.mxu0 0.0
    %1584 = vmatmul.mubr.f32.gmra.mrb[0].mxu0 %v1517
    %v1585 = vpop.f32.mrb[0].mxu0
    %v1586 = vadd.f32 0.0, %v1585
    %v1587 = vpop.f32.mrb[0].mxu0
    %1588 = vdwg.mxu0
    %v1589 = vlaneseq
    %v1590 = vshrl.u32 %v1589, 7
    %v1591 = vsub.s32 0, %v1590
    %v1592 = vrot.slane %v1513, %v1591
    %v1593 = vmul.f32 %v1265, %v1592
    %v1594 = vmul.f32 %v1266, %v1592
    %v1595 = vmul.f32 %v1267, %v1592
    %v1596 = vmul.f32 %v1268, %v1592
    %v1597 = vlaneseq
    %v1598 = vshrl.u32 %v1597, 7
    %v1599 = vsub.s32 0, %v1598
    %v1600 = vrot.slane %v1586, %v1599
    %v1601 = vadd.f32 %v1593, %v1600
    %v1602 = vadd.f32 %v1594, %v1600
    %v1603 = vadd.f32 %v1595, %v1600
    %v1604 = vadd.f32 %v1596, %v1600
    %v1605 = vmax.f32 %v1601, 0.0
    %v1606 = vmax.f32 %v1602, 0.0
    %v1607 = vmax.f32 %v1603, 0.0
    %v1608 = vmax.f32 %v1604, 0.0
    %1609 = vst [vmem:[#allocation9] sm:$0xff] %v1605
    %1610 = vst [vmem:[#allocation9 + $0x8] sm:$0xff] %v1606
    %1611 = vst [vmem:[#allocation9 + $0x10] sm:$0xff] %v1607
    %1612 = vst [vmem:[#allocation9 + $0x18] sm:$0xff] %v1608
    // Predicated region
    $region46: #{tpu_custom_call.1} parent=1 // pred_check
      _
    $region47: #{tpu_custom_call.1} parent=1 // pred_check_branch
      %1614 = sbr.rel (0) target = $region49
    $region48: #{tpu_custom_call.1} parent=1 // pred_region
      %s1616 = ssub.s32 512, 512
      %1617 = vsyncadd [#allocation6], %s1616
      %s1618 = sshll.u32 [#allocation9], 4
      %s1619 = int_to_ptr.vmem [resolvable:$true] %s1618
      %1624 = dma.vmem_to_hbm [thread:$0]  %s1619, 512, %s9, [#allocation6], 128, 128, 8
    $region49: #{tpu_custom_call.1} parent=1 // pred_fallthru
      _
    // Predicated region
    $region50: #{tpu_custom_call.1} parent=1 // pred_check
      _
    $region51: #{tpu_custom_call.1} parent=1 // pred_check_branch
      %1626 = sbr.rel (0) target = $region53
    $region52: #{tpu_custom_call.1} parent=1 // pred_region
      %1627 = dma.done [#allocation6], 512
    $region53: #{tpu_custom_call.1} parent=1 // pred_fallthru
      _
    %1628 = vsyncpa [#allocation5], 1
    %1629 = vsyncpa [#allocation8], 1
    %1630 = vsyncpa [#allocation6], 1

</llo_original>
